<compile_context>
chip_gen: v7x
topology: tpu7x:2x2x1
jax: 0.10.0
libtpu: 0.0.40
codegen_flags: <defaults>
</compile_context>

<pallas_src>
import functools

import jax
import jax.numpy as jnp
from jax import lax
from jax.experimental import pallas as pl
from jax.experimental.pallas import tpu as pltpu


def _resnext_kernel(xt_ref, w1_ref, w2_ref, w3_ref, *rest,
                    K, stride, pad, th, wo, has_proj, mxu_dtype):
    """One (batch, output-row-tile) step of the fused ResidualNeXt block.

    xt_ref : (TH_in, Wp, Cin)    zero-padded, halo'd NHWC input tile
    w1_ref : (Cin,  Cmid)        Block1 1x1 weights
    w2_ref : (K, K, Cmid, Cmid)  Block2 grouped weights (block-diagonal dense)
    w3_ref : (Cmid, Cout)        Block3 1x1 weights
    wr_ref : (Cin,  Cout)        residual 1x1 projection (only if has_proj)
    o_ref  : (TH, Wo, Cout)
    """
    if has_proj:
        wr_ref, o_ref = rest
    else:
        (o_ref,) = rest

    f32 = jnp.float32
    x = xt_ref[...]                                        # (TH_in, Wp, Cin)
    th_in, wp, cin = x.shape
    cmid = w1_ref.shape[1]
    cout = o_ref.shape[-1]

    # ---- Block1: 1x1 conv + ReLU over the whole halo'd tile (MXU) ----------
    x2 = x.reshape(th_in * wp, cin).astype(mxu_dtype)
    y1 = jnp.dot(x2, w1_ref[...].astype(mxu_dtype), preferred_element_type=f32)
    y1 = jnp.maximum(y1, 0.0).astype(mxu_dtype).reshape(th_in, wp, cmid)

    # ---- Block2: KxK grouped conv (dense block-diagonal weight) + ReLU -----
    w2 = w2_ref[...].astype(mxu_dtype)     # hoisted: loaded/cast once per tile
    acc = jnp.zeros((th * wo, cmid), f32)
    for kh in range(K):
        for kw in range(K):
            # TODO(synk): for stride > 1 this is an in-VMEM strided (sublane)
            # gather per tap; move the striding into the DMA / wrapper layout.
            win = y1[kh:kh + (th - 1) * stride + 1:stride,
                     kw:kw + (wo - 1) * stride + 1:stride, :]
            acc = acc + jnp.dot(win.reshape(th * wo, cmid), w2[kh, kw],
                                preferred_element_type=f32)
    y2 = jnp.maximum(acc, 0.0).astype(mxu_dtype)           # (TH*Wo, Cmid)

    # ---- Block3: 1x1 conv + ReLU -------------------------------------------
    y3 = jnp.dot(y2, w3_ref[...].astype(mxu_dtype), preferred_element_type=f32)
    y3 = jnp.maximum(y3, 0.0)

    # ---- residual branch -----------------------------------------------------
    xs = x[pad:pad + (th - 1) * stride + 1:stride,
           pad:pad + (wo - 1) * stride + 1:stride, :]      # (TH, Wo, Cin)
    if has_proj:
        res = jnp.dot(xs.reshape(th * wo, cin).astype(mxu_dtype),
                      wr_ref[...].astype(mxu_dtype),
                      preferred_element_type=f32)
    else:
        res = xs.reshape(th * wo, cout).astype(f32)        # identity (Cin==Cout)

    # NOTE: Cout < 128 at toy channel counts -> masked stores; at production
    # channel counts (>=128) this store is lane-dense.
    o_ref[...] = (y3 + res).reshape(th, wo, cout).astype(o_ref.dtype)


def _pick_tile_rows(ho, est_bytes, budget):
    """Largest divisor of Ho fitting the VMEM budget, preferring >=2 tiles."""
    divisors = [d for d in range(1, ho + 1) if ho % d == 0]
    fitting = [d for d in divisors if est_bytes(d) <= budget] or [1]
    multi = [d for d in fitting if ho // d >= 2]   # >=2 tiles => pipeline overlap
    return max(multi) if multi else max(fitting)


def residual_next(x_nchw, w1, w2, w3, wr=None, *, stride=1,
                  mxu_dtype=jnp.bfloat16, max_tile_bytes=6 * 1024 * 1024,
                  tile_rows=None):
    """ResidualNeXt forward.

    x_nchw : (N, Cin, H, W)
    w1     : (Cmid, Cin, 1, 1)             Block1  (Cmid = out_channels // 2)
    w2     : (Cmid, Cmid // groups, K, K)  Block2 grouped conv
    w3     : (Cout, Cmid, 1, 1)            Block3
    wr     : (Cout, Cin, 1, 1) or None     residual 1x1 projection weights
    """
    n, cin, h, w = x_nchw.shape
    cmid = w1.shape[0]
    cout = w3.shape[0]
    K = w2.shape[-1]
    cpg = w2.shape[1]
    if K % 2 != 1:
        raise ValueError("only odd filter_size supported (pad = K // 2)")
    pad = K // 2
    ho = (h + 2 * pad - K) // stride + 1
    wo = (w + 2 * pad - K) // stride + 1

    has_proj = (stride != 1) or (cin != cout)
    if has_proj and wr is None:
        raise ValueError("wr required when stride != 1 or Cin != Cout")

    # ---- output-row tile sizing against a per-step VMEM budget --------------
    wp8 = -(-(w + 2 * pad) // 8) * 8            # width padded to sublane mult.
    itemsize = jnp.dtype(x_nchw.dtype).itemsize

    def est_bytes(th):
        th_in = (th - 1) * stride + K
        io = 2 * (th_in * wp8 * cin * itemsize + th * wo * cout * itemsize)
        inter = th_in * wp8 * cmid * 6 + th * wo * (cmid * 16 + cout * 12)
        wts = 8 * (cin * cmid + K * K * cmid * cmid + cmid * cout + cin * cout)
        return io + inter + wts

    th = tile_rows if tile_rows is not None else _pick_tile_rows(
        ho, est_bytes, max_tile_bytes)
    if ho % th:
        raise ValueError("tile_rows must divide the output height")
    n_ht = ho // th
    th_in = (th - 1) * stride + K

    # ---- layout glue (NCHW boundary; keep NHWC end-to-end to drop these) ----
    x_nhwc = jnp.transpose(x_nchw, (0, 2, 3, 1))
    x_pad = jnp.pad(x_nhwc, ((0, 0), (pad, pad), (pad, wp8 - w - pad), (0, 0)))
    # Overlapping (K-1)-row halo tiles, materialized once so plain Blocked
    # BlockSpecs (auto double-buffered; sweep pl.Buffered(3) if DMA exposed)
    # can be used.  Extra HBM traffic is only ~2*pad/TH.
    xt = jnp.stack(
        [lax.slice_in_dim(x_pad, i * th * stride, i * th * stride + th_in,
                          axis=1) for i in range(n_ht)],
        axis=1)                                   # (N, nHt, TH_in, Wp, Cin)

    # ---- weight re-layout: 1x1 -> (Cin, Cout); grouped -> block-diag dense --
    w1k = jnp.transpose(w1[:, :, 0, 0], (1, 0))             # (Cin,  Cmid)
    w3k = jnp.transpose(w3[:, :, 0, 0], (1, 0))             # (Cmid, Cout)
    w2t = jnp.transpose(w2, (2, 3, 1, 0))                   # (K, K, cpg, Cmid)
    ci = jnp.arange(cmid)
    grp_mask = (ci[:, None] // cpg) == (ci[None, :] // cpg)
    w2d = w2t[:, :, ci % cpg, :] * grp_mask[None, None, :, :].astype(w2.dtype)

    kernel = functools.partial(
        _resnext_kernel, K=K, stride=stride, pad=pad, th=th, wo=wo,
        has_proj=has_proj, mxu_dtype=mxu_dtype)

    in_specs = [
        pl.BlockSpec((None, None, th_in, wp8, cin),
                     lambda b, i: (b, i, 0, 0, 0)),
        pl.BlockSpec((cin, cmid), lambda b, i: (0, 0)),
        pl.BlockSpec((K, K, cmid, cmid), lambda b, i: (0, 0, 0, 0)),
        pl.BlockSpec((cmid, cout), lambda b, i: (0, 0)),
    ]
    args = [xt, w1k, w2d, w3k]
    if has_proj:
        in_specs.append(pl.BlockSpec((cin, cout), lambda b, i: (0, 0)))
        args.append(jnp.transpose(wr[:, :, 0, 0], (1, 0)))

    out_nhwc = pl.pallas_call(
        kernel,
        out_shape=jax.ShapeDtypeStruct((n, ho, wo, cout), x_nchw.dtype),
        grid_spec=pltpu.PrefetchScalarGridSpec(
            num_scalar_prefetch=0,
            grid=(n, n_ht),
            in_specs=in_specs,
            out_specs=pl.BlockSpec((None, th, wo, cout),
                                   lambda b, i: (b, i, 0, 0)),
        ),
        compiler_params=pltpu.CompilerParams(
            dimension_semantics=("parallel", "parallel"),
            vmem_limit_bytes=32 * 1024 * 1024),
    )(*args)

    return jnp.transpose(out_nhwc, (0, 3, 1, 2))            # back to NCHW


def _reference(x, w1, w2, w3, wr, *, stride, groups, cast_dtype=jnp.float32):
    """Pure-JAX/lax reference mirroring the PyTorch forward (and, via
    `cast_dtype`, the kernel's optional bf16 MXU-operand casting)."""
    dn = ("NCHW", "OIHW", "NCHW")
    f32 = jnp.float32
    hi = lax.Precision.HIGHEST
    c = lambda a: a.astype(cast_dtype)
    pad = w2.shape[-1] // 2

    y = lax.conv_general_dilated(c(x), c(w1), (1, 1), "VALID",
                                 dimension_numbers=dn, precision=hi,
                                 preferred_element_type=f32)
    y = jnp.maximum(y, 0.0)
    y = lax.conv_general_dilated(c(y), c(w2), (stride, stride),
                                 ((pad, pad), (pad, pad)),
                                 dimension_numbers=dn,
                                 feature_group_count=groups, precision=hi,
                                 preferred_element_type=f32)
    y = jnp.maximum(y, 0.0)
    y = lax.conv_general_dilated(c(y), c(w3), (1, 1), "VALID",
                                 dimension_numbers=dn, precision=hi,
                                 preferred_element_type=f32)
    y = jnp.maximum(y, 0.0)
    if wr is None:
        res = x.astype(f32)
    else:
        res = lax.conv_general_dilated(c(x), c(wr), (stride, stride), "VALID",
                                       dimension_numbers=dn, precision=hi,
                                       preferred_element_type=f32)
    return (y + res).astype(x.dtype)


if __name__ == "__main__":
    # ResidualNeXt((N, Cin, H, W), filter_size=3, out_channels=16, strides=1,
    #              groups=4):
    #   Block1: 1x1 Cin->8, Block2: 3x3 grouped(4) 8->8, Block3: 1x1 8->16,
    #   edit_residue: 1x1 Cin->16 (since Cin != out_channels).
    N, Cin, H, W = 2, 4, 16, 16
    out_channels, filter_size, groups, stride = 16, 3, 4, 1
    cmid = out_channels // 2

    key = jax.random.PRNGKey(0)
    kx, k1, k2, k3, kr = jax.random.split(key, 5)
    x = jax.random.normal(kx, (N, Cin, H, W), dtype=jnp.float32)
    w1 = jax.random.normal(k1, (cmid, Cin, 1, 1), dtype=jnp.float32) * 0.1
    w2 = jax.random.normal(
        k2, (cmid, cmid // groups, filter_size, filter_size),
        dtype=jnp.float32) * 0.1
    w3 = jax.random.normal(k3, (out_channels, cmid, 1, 1), dtype=jnp.float32) * 0.1
    wr = jax.random.normal(kr, (out_channels, Cin, 1, 1), dtype=jnp.float32) * 0.1

    # f32 MXU operands: tight check against the f32 lax reference.
    out32 = residual_next(x, w1, w2, w3, wr, stride=stride,
                          mxu_dtype=jnp.float32)
    out32 = jax.block_until_ready(out32)
    ref32 = _reference(x, w1, w2, w3, wr, stride=stride, groups=groups)
    assert out32.shape == (N, out_channels, H, W), out32.shape
    assert jnp.allclose(out32, ref32, atol=1e-4, rtol=1e-4), \
        float(jnp.max(jnp.abs(out32 - ref32)))

    # bf16 MXU operands (default; the fast path on v6e/v7x), f32 accumulation,
    # checked against a reference that applies the same operand casts.
    outbf = residual_next(x, w1, w2, w3, wr, stride=stride)
    outbf = jax.block_until_ready(outbf)
    refbf = _reference(x, w1, w2, w3, wr, stride=stride, groups=groups,
                       cast_dtype=jnp.bfloat16)
    assert jnp.allclose(outbf, refbf, atol=2e-2, rtol=2e-2), \
        float(jnp.max(jnp.abs(outbf - refbf)))

    print("KERNEL_OK")
</pallas_src>

<mosaic_0001>
module attributes {stable_mosaic.version = 11 : i64} {
  func.func @_resnext_kernel(%arg0: i32, %arg1: i32, %arg2: memref<1x1x10x24x4xf32, #tpu.memory_space<vmem>>, %arg3: memref<4x8xf32, #tpu.memory_space<vmem>>, %arg4: memref<3x3x8x8xf32, #tpu.memory_space<vmem>>, %arg5: memref<8x16xf32, #tpu.memory_space<vmem>>, %arg6: memref<4x16xf32, #tpu.memory_space<vmem>>, %arg7: memref<1x8x16x16xf32, #tpu.memory_space<vmem>>) attributes {dimension_semantics = [#tpu.dimension_semantics<parallel>, #tpu.dimension_semantics<parallel>], iteration_bounds = array<i64: 2, 2>, scalar_prefetch = 0 : i64, scratch_operands = 0 : i64, tpu.core_type = #tpu.core_type<tc>, window_params = [{transform_indices = @transform_0, window_bounds = array<i64: 1, 1, 10, 24, 4>}, {pipeline_mode = #tpu.pipeline_mode<synchronous>, transform_indices = @transform_1, window_bounds = array<i64: 4, 8>}, {pipeline_mode = #tpu.pipeline_mode<synchronous>, transform_indices = @transform_2, window_bounds = array<i64: 3, 3, 8, 8>}, {pipeline_mode = #tpu.pipeline_mode<synchronous>, transform_indices = @transform_3, window_bounds = array<i64: 8, 16>}, {pipeline_mode = #tpu.pipeline_mode<synchronous>, transform_indices = @transform_4, window_bounds = array<i64: 4, 16>}, {transform_indices = @transform_5, window_bounds = array<i64: 1, 8, 16, 16>}]} {
    %c0 = arith.constant 0 : index
    %c0_0 = arith.constant 0 : index
    %c0_1 = arith.constant 0 : index
    %c0_2 = arith.constant 0 : index
    %c0_3 = arith.constant 0 : index
    %0 = vector.load %arg2[%c0, %c0_0, %c0_1, %c0_2, %c0_3] : memref<1x1x10x24x4xf32, #tpu.memory_space<vmem>>, vector<1x1x10x24x4xf32>
    %1 = vector.shape_cast %0 : vector<1x1x10x24x4xf32> to vector<10x24x4xf32>
    %2 = vector.shape_cast %1 : vector<10x24x4xf32> to vector<240x4xf32>
    %c0_4 = arith.constant 0 : index
    %c0_5 = arith.constant 0 : index
    %3 = vector.load %arg3[%c0_4, %c0_5] : memref<4x8xf32, #tpu.memory_space<vmem>>, vector<4x8xf32>
    %cst = arith.constant dense<0.000000e+00> : vector<240x8xf32>
    %4 = tpu.matmul %2, %3, %cst {dimension_numbers = #tpu.dot_dimension_numbers<[1], [0], [0], [1], [0, 0, 1, 1], [], []>} : vector<240x4xf32>, vector<4x8xf32>, vector<240x8xf32> -> vector<240x8xf32>
    %cst_6 = arith.constant 0.000000e+00 : f32
    %5 = vector.broadcast %cst_6 : f32 to vector<240x8xf32>
    %6 = arith.maximumf %4, %5 : vector<240x8xf32>
    %7 = vector.shape_cast %6 : vector<240x8xf32> to vector<10x24x8xf32>
    %c0_7 = arith.constant 0 : index
    %c0_8 = arith.constant 0 : index
    %c0_9 = arith.constant 0 : index
    %c0_10 = arith.constant 0 : index
    %8 = vector.load %arg4[%c0_7, %c0_8, %c0_9, %c0_10] : memref<3x3x8x8xf32, #tpu.memory_space<vmem>>, vector<3x3x8x8xf32>
    %cst_11 = arith.constant 0.000000e+00 : f32
    %9 = vector.broadcast %cst_11 : f32 to vector<128x8xf32>
    %10 = vector.extract_strided_slice %7 {offsets = [0, 0, 0], sizes = [8, 16, 8], strides = [1, 1, 1]} : vector<10x24x8xf32> to vector<8x16x8xf32>
    %11 = vector.shape_cast %10 : vector<8x16x8xf32> to vector<128x8xf32>
    %12 = vector.extract_strided_slice %8 {offsets = [0, 0, 0, 0], sizes = [1, 1, 8, 8], strides = [1, 1, 1, 1]} : vector<3x3x8x8xf32> to vector<1x1x8x8xf32>
    %13 = vector.shape_cast %12 : vector<1x1x8x8xf32> to vector<8x8xf32>
    %cst_12 = arith.constant dense<0.000000e+00> : vector<128x8xf32>
    %14 = tpu.matmul %11, %13, %cst_12 {dimension_numbers = #tpu.dot_dimension_numbers<[1], [0], [0], [1], [0, 0, 1, 1], [], []>} : vector<128x8xf32>, vector<8x8xf32>, vector<128x8xf32> -> vector<128x8xf32>
    %15 = arith.addf %9, %14 : vector<128x8xf32>
    %16 = vector.extract_strided_slice %7 {offsets = [0, 1, 0], sizes = [8, 16, 8], strides = [1, 1, 1]} : vector<10x24x8xf32> to vector<8x16x8xf32>
    %17 = vector.shape_cast %16 : vector<8x16x8xf32> to vector<128x8xf32>
    %18 = vector.extract_strided_slice %8 {offsets = [0, 1, 0, 0], sizes = [1, 1, 8, 8], strides = [1, 1, 1, 1]} : vector<3x3x8x8xf32> to vector<1x1x8x8xf32>
    %19 = vector.shape_cast %18 : vector<1x1x8x8xf32> to vector<8x8xf32>
    %cst_13 = arith.constant dense<0.000000e+00> : vector<128x8xf32>
    %20 = tpu.matmul %17, %19, %cst_13 {dimension_numbers = #tpu.dot_dimension_numbers<[1], [0], [0], [1], [0, 0, 1, 1], [], []>} : vector<128x8xf32>, vector<8x8xf32>, vector<128x8xf32> -> vector<128x8xf32>
    %21 = arith.addf %15, %20 : vector<128x8xf32>
    %22 = vector.extract_strided_slice %7 {offsets = [0, 2, 0], sizes = [8, 16, 8], strides = [1, 1, 1]} : vector<10x24x8xf32> to vector<8x16x8xf32>
    %23 = vector.shape_cast %22 : vector<8x16x8xf32> to vector<128x8xf32>
    %24 = vector.extract_strided_slice %8 {offsets = [0, 2, 0, 0], sizes = [1, 1, 8, 8], strides = [1, 1, 1, 1]} : vector<3x3x8x8xf32> to vector<1x1x8x8xf32>
    %25 = vector.shape_cast %24 : vector<1x1x8x8xf32> to vector<8x8xf32>
    %cst_14 = arith.constant dense<0.000000e+00> : vector<128x8xf32>
    %26 = tpu.matmul %23, %25, %cst_14 {dimension_numbers = #tpu.dot_dimension_numbers<[1], [0], [0], [1], [0, 0, 1, 1], [], []>} : vector<128x8xf32>, vector<8x8xf32>, vector<128x8xf32> -> vector<128x8xf32>
    %27 = arith.addf %21, %26 : vector<128x8xf32>
    %28 = vector.extract_strided_slice %7 {offsets = [1, 0, 0], sizes = [8, 16, 8], strides = [1, 1, 1]} : vector<10x24x8xf32> to vector<8x16x8xf32>
    %29 = vector.shape_cast %28 : vector<8x16x8xf32> to vector<128x8xf32>
    %30 = vector.extract_strided_slice %8 {offsets = [1, 0, 0, 0], sizes = [1, 1, 8, 8], strides = [1, 1, 1, 1]} : vector<3x3x8x8xf32> to vector<1x1x8x8xf32>
    %31 = vector.shape_cast %30 : vector<1x1x8x8xf32> to vector<8x8xf32>
    %cst_15 = arith.constant dense<0.000000e+00> : vector<128x8xf32>
    %32 = tpu.matmul %29, %31, %cst_15 {dimension_numbers = #tpu.dot_dimension_numbers<[1], [0], [0], [1], [0, 0, 1, 1], [], []>} : vector<128x8xf32>, vector<8x8xf32>, vector<128x8xf32> -> vector<128x8xf32>
    %33 = arith.addf %27, %32 : vector<128x8xf32>
    %34 = vector.extract_strided_slice %7 {offsets = [1, 1, 0], sizes = [8, 16, 8], strides = [1, 1, 1]} : vector<10x24x8xf32> to vector<8x16x8xf32>
    %35 = vector.shape_cast %34 : vector<8x16x8xf32> to vector<128x8xf32>
    %36 = vector.extract_strided_slice %8 {offsets = [1, 1, 0, 0], sizes = [1, 1, 8, 8], strides = [1, 1, 1, 1]} : vector<3x3x8x8xf32> to vector<1x1x8x8xf32>
    %37 = vector.shape_cast %36 : vector<1x1x8x8xf32> to vector<8x8xf32>
    %cst_16 = arith.constant dense<0.000000e+00> : vector<128x8xf32>
    %38 = tpu.matmul %35, %37, %cst_16 {dimension_numbers = #tpu.dot_dimension_numbers<[1], [0], [0], [1], [0, 0, 1, 1], [], []>} : vector<128x8xf32>, vector<8x8xf32>, vector<128x8xf32> -> vector<128x8xf32>
    %39 = arith.addf %33, %38 : vector<128x8xf32>
    %40 = vector.extract_strided_slice %7 {offsets = [1, 2, 0], sizes = [8, 16, 8], strides = [1, 1, 1]} : vector<10x24x8xf32> to vector<8x16x8xf32>
    %41 = vector.shape_cast %40 : vector<8x16x8xf32> to vector<128x8xf32>
    %42 = vector.extract_strided_slice %8 {offsets = [1, 2, 0, 0], sizes = [1, 1, 8, 8], strides = [1, 1, 1, 1]} : vector<3x3x8x8xf32> to vector<1x1x8x8xf32>
    %43 = vector.shape_cast %42 : vector<1x1x8x8xf32> to vector<8x8xf32>
    %cst_17 = arith.constant dense<0.000000e+00> : vector<128x8xf32>
    %44 = tpu.matmul %41, %43, %cst_17 {dimension_numbers = #tpu.dot_dimension_numbers<[1], [0], [0], [1], [0, 0, 1, 1], [], []>} : vector<128x8xf32>, vector<8x8xf32>, vector<128x8xf32> -> vector<128x8xf32>
    %45 = arith.addf %39, %44 : vector<128x8xf32>
    %46 = vector.extract_strided_slice %7 {offsets = [2, 0, 0], sizes = [8, 16, 8], strides = [1, 1, 1]} : vector<10x24x8xf32> to vector<8x16x8xf32>
    %47 = vector.shape_cast %46 : vector<8x16x8xf32> to vector<128x8xf32>
    %48 = vector.extract_strided_slice %8 {offsets = [2, 0, 0, 0], sizes = [1, 1, 8, 8], strides = [1, 1, 1, 1]} : vector<3x3x8x8xf32> to vector<1x1x8x8xf32>
    %49 = vector.shape_cast %48 : vector<1x1x8x8xf32> to vector<8x8xf32>
    %cst_18 = arith.constant dense<0.000000e+00> : vector<128x8xf32>
    %50 = tpu.matmul %47, %49, %cst_18 {dimension_numbers = #tpu.dot_dimension_numbers<[1], [0], [0], [1], [0, 0, 1, 1], [], []>} : vector<128x8xf32>, vector<8x8xf32>, vector<128x8xf32> -> vector<128x8xf32>
    %51 = arith.addf %45, %50 : vector<128x8xf32>
    %52 = vector.extract_strided_slice %7 {offsets = [2, 1, 0], sizes = [8, 16, 8], strides = [1, 1, 1]} : vector<10x24x8xf32> to vector<8x16x8xf32>
    %53 = vector.shape_cast %52 : vector<8x16x8xf32> to vector<128x8xf32>
    %54 = vector.extract_strided_slice %8 {offsets = [2, 1, 0, 0], sizes = [1, 1, 8, 8], strides = [1, 1, 1, 1]} : vector<3x3x8x8xf32> to vector<1x1x8x8xf32>
    %55 = vector.shape_cast %54 : vector<1x1x8x8xf32> to vector<8x8xf32>
    %cst_19 = arith.constant dense<0.000000e+00> : vector<128x8xf32>
    %56 = tpu.matmul %53, %55, %cst_19 {dimension_numbers = #tpu.dot_dimension_numbers<[1], [0], [0], [1], [0, 0, 1, 1], [], []>} : vector<128x8xf32>, vector<8x8xf32>, vector<128x8xf32> -> vector<128x8xf32>
    %57 = arith.addf %51, %56 : vector<128x8xf32>
    %58 = vector.extract_strided_slice %7 {offsets = [2, 2, 0], sizes = [8, 16, 8], strides = [1, 1, 1]} : vector<10x24x8xf32> to vector<8x16x8xf32>
    %59 = vector.shape_cast %58 : vector<8x16x8xf32> to vector<128x8xf32>
    %60 = vector.extract_strided_slice %8 {offsets = [2, 2, 0, 0], sizes = [1, 1, 8, 8], strides = [1, 1, 1, 1]} : vector<3x3x8x8xf32> to vector<1x1x8x8xf32>
    %61 = vector.shape_cast %60 : vector<1x1x8x8xf32> to vector<8x8xf32>
    %cst_20 = arith.constant dense<0.000000e+00> : vector<128x8xf32>
    %62 = tpu.matmul %59, %61, %cst_20 {dimension_numbers = #tpu.dot_dimension_numbers<[1], [0], [0], [1], [0, 0, 1, 1], [], []>} : vector<128x8xf32>, vector<8x8xf32>, vector<128x8xf32> -> vector<128x8xf32>
    %63 = arith.addf %57, %62 : vector<128x8xf32>
    %cst_21 = arith.constant 0.000000e+00 : f32
    %64 = vector.broadcast %cst_21 : f32 to vector<128x8xf32>
    %65 = arith.maximumf %63, %64 : vector<128x8xf32>
    %c0_22 = arith.constant 0 : index
    %c0_23 = arith.constant 0 : index
    %66 = vector.load %arg5[%c0_22, %c0_23] : memref<8x16xf32, #tpu.memory_space<vmem>>, vector<8x16xf32>
    %cst_24 = arith.constant dense<0.000000e+00> : vector<128x16xf32>
    %67 = tpu.matmul %65, %66, %cst_24 {dimension_numbers = #tpu.dot_dimension_numbers<[1], [0], [0], [1], [0, 0, 1, 1], [], []>} : vector<128x8xf32>, vector<8x16xf32>, vector<128x16xf32> -> vector<128x16xf32>
    %cst_25 = arith.constant 0.000000e+00 : f32
    %68 = vector.broadcast %cst_25 : f32 to vector<128x16xf32>
    %69 = arith.maximumf %67, %68 : vector<128x16xf32>
    %70 = vector.extract_strided_slice %1 {offsets = [1, 1, 0], sizes = [8, 16, 4], strides = [1, 1, 1]} : vector<10x24x4xf32> to vector<8x16x4xf32>
    %71 = vector.shape_cast %70 : vector<8x16x4xf32> to vector<128x4xf32>
    %c0_26 = arith.constant 0 : index
    %c0_27 = arith.constant 0 : index
    %72 = vector.load %arg6[%c0_26, %c0_27] : memref<4x16xf32, #tpu.memory_space<vmem>>, vector<4x16xf32>
    %cst_28 = arith.constant dense<0.000000e+00> : vector<128x16xf32>
    %73 = tpu.matmul %71, %72, %cst_28 {dimension_numbers = #tpu.dot_dimension_numbers<[1], [0], [0], [1], [0, 0, 1, 1], [], []>} : vector<128x4xf32>, vector<4x16xf32>, vector<128x16xf32> -> vector<128x16xf32>
    %74 = arith.addf %69, %73 : vector<128x16xf32>
    %75 = vector.shape_cast %74 : vector<128x16xf32> to vector<8x16x16xf32>
    %c0_29 = arith.constant 0 : index
    %c0_30 = arith.constant 0 : index
    %c0_31 = arith.constant 0 : index
    %c0_32 = arith.constant 0 : index
    %76 = vector.load %arg7[%c0_29, %c0_30, %c0_31, %c0_32] : memref<1x8x16x16xf32, #tpu.memory_space<vmem>>, vector<1x8x16x16xf32>
    %77 = vector.shape_cast %76 : vector<1x8x16x16xf32> to vector<8x16x16xf32>
    %78 = vector.shape_cast %75 : vector<8x16x16xf32> to vector<1x8x16x16xf32>
    tpu.vector_store %arg7[%c0_29, %c0_30, %c0_31, %c0_32], %78 {strides = array<i32>} : memref<1x8x16x16xf32, #tpu.memory_space<vmem>>, vector<1x8x16x16xf32>,
    return
  }
  func.func @transform_0(%arg0: i32, %arg1: i32) -> (i32, i32, i32, i32, i32) {
    %c0_i32 = arith.constant 0 : i32
    %c0_i32_0 = arith.constant 0 : i32
    %c0_i32_1 = arith.constant 0 : i32
    %c0_i32_2 = arith.constant 0 : i32
    return %arg0, %arg1, %c0_i32, %c0_i32_0, %c0_i32_1 : i32, i32, i32, i32, i32
  }
  func.func @transform_1(%arg0: i32, %arg1: i32) -> (i32, i32) {
    %c0_i32 = arith.constant 0 : i32
    %c0_i32_0 = arith.constant 0 : i32
    %c0_i32_1 = arith.constant 0 : i32
    return %c0_i32, %c0_i32_0 : i32, i32
  }
  func.func @transform_2(%arg0: i32, %arg1: i32) -> (i32, i32, i32, i32) {
    %c0_i32 = arith.constant 0 : i32
    %c0_i32_0 = arith.constant 0 : i32
    %c0_i32_1 = arith.constant 0 : i32
    %c0_i32_2 = arith.constant 0 : i32
    %c0_i32_3 = arith.constant 0 : i32
    return %c0_i32, %c0_i32_0, %c0_i32_1, %c0_i32_2 : i32, i32, i32, i32
  }
  func.func @transform_3(%arg0: i32, %arg1: i32) -> (i32, i32) {
    %c0_i32 = arith.constant 0 : i32
    %c0_i32_0 = arith.constant 0 : i32
    %c0_i32_1 = arith.constant 0 : i32
    return %c0_i32, %c0_i32_0 : i32, i32
  }
  func.func @transform_4(%arg0: i32, %arg1: i32) -> (i32, i32) {
    %c0_i32 = arith.constant 0 : i32
    %c0_i32_0 = arith.constant 0 : i32
    %c0_i32_1 = arith.constant 0 : i32
    return %c0_i32, %c0_i32_0 : i32, i32
  }
  func.func @transform_5(%arg0: i32, %arg1: i32) -> (i32, i32, i32, i32) {
    %c0_i32 = arith.constant 0 : i32
    %c0_i32_0 = arith.constant 0 : i32
    %c0_i32_1 = arith.constant 0 : i32
    return %arg0, %arg1, %c0_i32, %c0_i32_0 : i32, i32, i32, i32
  }
}

</mosaic_0001>

<llo_original>
// kernel: tpu_custom_call.1
$region0: #{tpu_custom_call.1}
  #allocation0 [shape = 'u32[]', space=smem, size = 0x4, offset = 0x4, fixed_abs, tag = 'smem constant byte address 0x4 - core index']
  #allocation1 [shape = 'u32[144,128]{1,0:T(1,128)}', space=vmem, size = 0x12000, scoped, tag = 'internal scratch']
  %s0 = inlined_call_operand.vmem [shape: f32[2,2,10,24,4], index: 0, kind: input, shape index: {}]
  %s1 = inlined_call_operand.vmem [shape: f32[4,8], index: 1, kind: input, shape index: {}]
  %s2 = inlined_call_operand.vmem [shape: f32[3,3,8,8], index: 2, kind: input, shape index: {}]
  %s3 = inlined_call_operand.vmem [shape: f32[8,16], index: 3, kind: input, shape index: {}]
  %s4 = inlined_call_operand.vmem [shape: f32[4,16], index: 4, kind: input, shape index: {}]
  %s5 = inlined_call_operand.hbm [shape: f32[2,16,16,16], index: 5, kind: output, shape index: {}]
  %s6 = sld [smem:[#allocation0]]
  $region53: #{tpu_custom_call.1} parent=0
    _
  %s8 = ssub.s32 1, %s6
  %s9 = scalar_select 0, %s8, %s6
  $region1: #{tpu_custom_call.1} parent=0
    #allocation2 [shape = 'u8[131072]{0}', space=vmem, size = 0x20000, scoped, tag = 'output window, operand 0']
    #allocation3 [shape = 's32[2]{0}', space=sflag, size = 0x8, scoped, tag = 'scoped memory for tpu_custom_call.1']
    %10 = vsyncpa [#allocation3], 0
    %s11 = scalar_lea.sflag [#allocation3], 1
    %12 = vsyncpa %s11, 0
    loop: start=0, step=1, limit=6
    $region2: #{tpu_custom_call.1} parent=1 // loop_pre_header
      _
    $region3: #{tpu_custom_call.1} parent=1 // loop_header
      %s14 = sphi 0, %s18
      %p15 = scmp.ge.s32.totalorder %s14, 6
      %s21 = sphi 0, %s33
      %s22 = sphi 0, %s29
      %s23 = sphi 0, %s21
      %s24 = sphi 0, %s22
      %s25 = sphi 0, %s23
      %s26 = sphi 0, %s24
      %s38 = sphi 0, %s40
      %s41 = sphi 0, %s38
      %s42 = sphi 0, %s41
      %s58 = sphi 0, %s42
      %s62 = sphi 0, %s62
      %s64 = sphi 0, %s62
      %s65 = sphi 0, %s64
      %s79 = sphi 0, %s65
      %s83 = sphi 0, %s83
      %s85 = sphi 0, %s83
      %s86 = sphi 0, %s85
      %s100 = sphi 0, %s86
      %s104 = sphi 0, %s104
      %s106 = sphi 0, %s104
      %s107 = sphi 0, %s106
      %s121 = sphi 0, %s107
      %s125 = sphi 0, %s125
      %s127 = sphi 0, %s125
      %s128 = sphi 0, %s127
      %s142 = sphi 0, %s128
      %s150 = sphi 0, %s152
      %s153 = sphi 0, %s150
      %s154 = sphi 0, %s153
      %s170 = sphi 0, %s154
    $region4: #{tpu_custom_call.1} parent=1 // loop_header_branch
      %17 = sbr.rel (%p15) target = $region8
    $region5: #{tpu_custom_call.1} parent=1 // loop_body
      %s19 = ssub.s32 %s14, 1
      %s20 = ssub.s32 %s14, 2
      %s27 = sadd.s32 1, %s22
      %p28 = scmp.ge.s32.totalorder %s27, 2
      %s29 = scalar_select %p28, 0, %s27
      %s30 = sadd.s32 1, %s21
      %s31 = scalar_select %p28, %s30, %s21
      %p32 = scmp.ge.s32.totalorder %s31, 2
      %s33 = scalar_select %p32, 0, %s31
      %s34 = ssub.s32 %s21, %s33
      %s35 = ssub.s32 %s22, %s29
      %s36 = sor.u32 %s34, %s35
      %p37 = scmp.eq.s32.totalorder %s36, 0
      %s39 = sadd.s32 %s38, 1
      %s40 = scalar_select %p37, %s38, %s39
      %p43 = pneg %p37
      %p44 = scmp.eq.s32.totalorder %s14, 3
      %p45 = por %p43, %p44
      %p46 = scmp.ne.s32.totalorder %s38, %s41
      %p47 = scmp.eq.s32.totalorder %s14, 0
      %p48 = por %p46, %p47
      %p49 = scmp.ne.s32.totalorder %s38, %s41
      %p50 = scmp.eq.s32.totalorder %s19, 3
      %p51 = por %p49, %p50
      %p52 = scmp.ne.s32.totalorder %s41, %s42
      %p53 = scmp.eq.s32.totalorder %s19, 0
      %p54 = por %p52, %p53
      %p55 = scmp.ne.s32.totalorder %s41, %s42
      %p56 = scmp.eq.s32.totalorder %s20, 3
      %p57 = por %p55, %p56
      %p59 = scmp.ne.s32.totalorder %s42, %s58
      %p60 = scmp.eq.s32.totalorder %s20, 0
      %p61 = por %p59, %p60
      %s63 = sadd.s32 %s62, 1
      %p66 = scmp.eq.s32.totalorder %s14, 3
      %p67 = scmp.ne.s32.totalorder %s62, %s64
      %p68 = scmp.eq.s32.totalorder %s14, 0
      %p69 = por %p67, %p68
      %p70 = scmp.ne.s32.totalorder %s62, %s64
      %p71 = scmp.eq.s32.totalorder %s19, 3
      %p72 = por %p70, %p71
      %p73 = scmp.ne.s32.totalorder %s64, %s65
      %p74 = scmp.eq.s32.totalorder %s19, 0
      %p75 = por %p73, %p74
      %p76 = scmp.ne.s32.totalorder %s64, %s65
      %p77 = scmp.eq.s32.totalorder %s20, 3
      %p78 = por %p76, %p77
      %p80 = scmp.ne.s32.totalorder %s65, %s79
      %p81 = scmp.eq.s32.totalorder %s20, 0
      %p82 = por %p80, %p81
      %s84 = sadd.s32 %s83, 1
      %p87 = scmp.eq.s32.totalorder %s14, 3
      %p88 = scmp.ne.s32.totalorder %s83, %s85
      %p89 = scmp.eq.s32.totalorder %s14, 0
      %p90 = por %p88, %p89
      %p91 = scmp.ne.s32.totalorder %s83, %s85
      %p92 = scmp.eq.s32.totalorder %s19, 3
      %p93 = por %p91, %p92
      %p94 = scmp.ne.s32.totalorder %s85, %s86
      %p95 = scmp.eq.s32.totalorder %s19, 0
      %p96 = por %p94, %p95
      %p97 = scmp.ne.s32.totalorder %s85, %s86
      %p98 = scmp.eq.s32.totalorder %s20, 3
      %p99 = por %p97, %p98
      %p101 = scmp.ne.s32.totalorder %s86, %s100
      %p102 = scmp.eq.s32.totalorder %s20, 0
      %p103 = por %p101, %p102
      %s105 = sadd.s32 %s104, 1
      %p108 = scmp.eq.s32.totalorder %s14, 3
      %p109 = scmp.ne.s32.totalorder %s104, %s106
      %p110 = scmp.eq.s32.totalorder %s14, 0
      %p111 = por %p109, %p110
      %p112 = scmp.ne.s32.totalorder %s104, %s106
      %p113 = scmp.eq.s32.totalorder %s19, 3
      %p114 = por %p112, %p113
      %p115 = scmp.ne.s32.totalorder %s106, %s107
      %p116 = scmp.eq.s32.totalorder %s19, 0
      %p117 = por %p115, %p116
      %p118 = scmp.ne.s32.totalorder %s106, %s107
      %p119 = scmp.eq.s32.totalorder %s20, 3
      %p120 = por %p118, %p119
      %p122 = scmp.ne.s32.totalorder %s107, %s121
      %p123 = scmp.eq.s32.totalorder %s20, 0
      %p124 = por %p122, %p123
      %s126 = sadd.s32 %s125, 1
      %p129 = scmp.eq.s32.totalorder %s14, 3
      %p130 = scmp.ne.s32.totalorder %s125, %s127
      %p131 = scmp.eq.s32.totalorder %s14, 0
      %p132 = por %p130, %p131
      %p133 = scmp.ne.s32.totalorder %s125, %s127
      %p134 = scmp.eq.s32.totalorder %s19, 3
      %p135 = por %p133, %p134
      %p136 = scmp.ne.s32.totalorder %s127, %s128
      %p137 = scmp.eq.s32.totalorder %s19, 0
      %p138 = por %p136, %p137
      %p139 = scmp.ne.s32.totalorder %s127, %s128
      %p140 = scmp.eq.s32.totalorder %s20, 3
      %p141 = por %p139, %p140
      %p143 = scmp.ne.s32.totalorder %s128, %s142
      %p144 = scmp.eq.s32.totalorder %s20, 0
      %p145 = por %p143, %p144
      %s146 = ssub.s32 %s21, %s33
      %s147 = ssub.s32 %s22, %s29
      %s148 = sor.u32 %s146, %s147
      %p149 = scmp.eq.s32.totalorder %s148, 0
      %s151 = sadd.s32 %s150, 1
      %s152 = scalar_select %p149, %s150, %s151
      %p155 = pneg %p149
      %p156 = scmp.eq.s32.totalorder %s14, 3
      %p157 = por %p155, %p156
      %p158 = scmp.ne.s32.totalorder %s150, %s153
      %p159 = scmp.eq.s32.totalorder %s14, 0
      %p160 = por %p158, %p159
      %p161 = scmp.ne.s32.totalorder %s150, %s153
      %p162 = scmp.eq.s32.totalorder %s19, 3
      %p163 = por %p161, %p162
      %p164 = scmp.ne.s32.totalorder %s153, %s154
      %p165 = scmp.eq.s32.totalorder %s19, 0
      %p166 = por %p164, %p165
      %p167 = scmp.ne.s32.totalorder %s153, %s154
      %p168 = scmp.eq.s32.totalorder %s20, 3
      %p169 = por %p167, %p168
      %p171 = scmp.ne.s32.totalorder %s154, %s170
      %p172 = scmp.eq.s32.totalorder %s20, 0
      %p173 = por %p171, %p172
      %p174 = scmp.le.s32.totalorder 1, %s14
      %p175 = scmp.lt.s32.totalorder %s14, 5
      %p176 = pnand %p174, %p175
      %p177 = pneg %p176
      // Predicated region
      $region9: #{tpu_custom_call.1} parent=5 // pred_check
        _
      $region10: #{tpu_custom_call.1} parent=5 // pred_check_branch
        %179 = sbr.rel (%p176) target = $region12
      $region11: #{tpu_custom_call.1} parent=5 // pred_region
        %s180 = ssub.s32 %s14, 1
        // Predicated region
        $region13: #{tpu_custom_call.1} parent=11 // pred_check
          %p181 = pneg %p75
        $region14: #{tpu_custom_call.1} parent=11 // pred_check_branch
          %183 = sbr.rel (%p181) target = $region16
        $region15: #{tpu_custom_call.1} parent=11 // pred_region
          _
        $region16: #{tpu_custom_call.1} parent=11 // pred_fallthru
          _
        // Predicated region
        $region17: #{tpu_custom_call.1} parent=11 // pred_check
          %p184 = pneg %p96
        $region18: #{tpu_custom_call.1} parent=11 // pred_check_branch
          %186 = sbr.rel (%p184) target = $region20
        $region19: #{tpu_custom_call.1} parent=11 // pred_region
          _
        $region20: #{tpu_custom_call.1} parent=11 // pred_fallthru
          _
        // Predicated region
        $region21: #{tpu_custom_call.1} parent=11 // pred_check
          %p187 = pneg %p117
        $region22: #{tpu_custom_call.1} parent=11 // pred_check_branch
          %189 = sbr.rel (%p187) target = $region24
        $region23: #{tpu_custom_call.1} parent=11 // pred_region
          _
        $region24: #{tpu_custom_call.1} parent=11 // pred_fallthru
          _
        // Predicated region
        $region25: #{tpu_custom_call.1} parent=11 // pred_check
          %p190 = pneg %p138
        $region26: #{tpu_custom_call.1} parent=11 // pred_check_branch
          %192 = sbr.rel (%p190) target = $region28
        $region27: #{tpu_custom_call.1} parent=11 // pred_region
          _
        $region28: #{tpu_custom_call.1} parent=11 // pred_fallthru
          _
      $region12: #{tpu_custom_call.1} parent=5 // pred_fallthru
        _
      %p193 = scmp.lt.s32.totalorder %s14, 4
      // Predicated region
      $region29: #{tpu_custom_call.1} parent=5 // pred_check
        %p194 = pneg %p193
      $region30: #{tpu_custom_call.1} parent=5 // pred_check_branch
        %196 = sbr.rel (%p194) target = $region32
      $region31: #{tpu_custom_call.1} parent=5 // pred_region
        // Predicated region
        $region33: #{tpu_custom_call.1} parent=31 // pred_check
          %p197 = pneg %p48
        $region34: #{tpu_custom_call.1} parent=31 // pred_check_branch
          %199 = sbr.rel (%p197) target = $region36
        $region35: #{tpu_custom_call.1} parent=31 // pred_region
          %p200 = scmp.lt.s32.totalorder %s21, 1
          %s201 = scalar_select %p200, %s21, 1
          %p202 = scmp.lt.s32.totalorder %s22, 1
          %s203 = scalar_select %p202, %s22, 1
          %s204 = smul.addr %s203, 30
          %s205 = smul.addr %s201, 60
          %s206 = sadd.s32 %s204, %s205
          %s207 = smul.addr %s206, 8
          %s208 = scalar_lea.vmem %s0, %s207
        $region36: #{tpu_custom_call.1} parent=31 // pred_fallthru
          _
      $region32: #{tpu_custom_call.1} parent=5 // pred_fallthru
        _
      %p209 = scmp.le.s32.totalorder 1, %s14
      %p210 = scmp.lt.s32.totalorder %s14, 5
      %p211 = pnand %p209, %p210
      %p212 = pneg %p211
      // Predicated region
      $region37: #{tpu_custom_call.1} parent=5 // pred_check
        _
      $region38: #{tpu_custom_call.1} parent=5 // pred_check_branch
        %214 = sbr.rel (%p211) target = $region40
      $region39: #{tpu_custom_call.1} parent=5 // pred_region
        %s215 = ssub.s32 %s14, 1
        %p216 = scmp.lt.s32.totalorder %s23, 1
        %s217 = scalar_select %p216, %s23, 1
        %p218 = scmp.lt.s32.totalorder %s24, 1
        %s219 = scalar_select %p218, %s24, 1
        %s220 = smul.addr %s219, 30
        %s221 = smul.addr %s217, 60
        %s222 = sadd.s32 %s220, %s221
        %s223 = smul.addr %s222, 8
        %s224 = scalar_lea.vmem %s0, %s223
        %p225 = pneg %p54
        %p226 = pneg %p51
        %p227 = pneg %p75
        %p228 = pneg %p72
        %p229 = pneg %p96
        %p230 = pneg %p93
        %p231 = pneg %p117
        %p232 = pneg %p114
        %p233 = pneg %p138
        %p234 = pneg %p135
        %p235 = pneg %p166
        %p236 = pneg %p163
        %s237 = sand.u32 %s153, 1
        %s238 = scalar_lea.sflag [#allocation3], %s237
        %s239 = sand.u32 %s153, 1
        %s240 = smul.addr %s239, 128
        %s241 = scalar_lea.vmem [#allocation2], %s240
        %p242 = scmp.lt.s32.totalorder %s23, 1
        %s243 = scalar_select %p242, %s23, 1
        %p244 = scmp.lt.s32.totalorder %s24, 1
        %s245 = scalar_select %p244, %s24, 1
        %s246 = smul.addr %s245, 30
        %s247 = smul.addr %s243, 60
        %s248 = sadd.s32 %s246, %s247
        %s249 = smul.addr %s248, 8
        %s250 = scalar_lea.vmem %s0, %s249
        %s251 = smul.u32 8, %s24
        %v252 = vld [vmem:[%s250] sm:$0xff]
        %v253 = vld [vmem:[%s250 + $0x8] sm:$0xff]
        %v254 = vld [vmem:[%s250 + $0x10] sm:$0xff]
        %v255 = vld [vmem:[%s250 + $0x18] sm:$0xff]
        %v256 = vld [vmem:[%s250 + $0x20] sm:$0xff]
        %v257 = vld [vmem:[%s250 + $0x28] sm:$0xff]
        %v258 = vld [vmem:[%s250 + $0x30] sm:$0xff]
        %v259 = vld [vmem:[%s250 + $0x38] sm:$0xff]
        %v260 = vld [vmem:[%s250 + $0x40] sm:$0xff]
        %v261 = vld [vmem:[%s250 + $0x48] sm:$0xff]
        %v262 = vld [vmem:[%s250 + $0x50] sm:$0xff]
        %v263 = vld [vmem:[%s250 + $0x58] sm:$0xff]
        %v264 = vld [vmem:[%s250 + $0x60] sm:$0xff]
        %v265 = vld [vmem:[%s250 + $0x68] sm:$0xff]
        %v266 = vld [vmem:[%s250 + $0x70] sm:$0xff]
        %v267 = vld [vmem:[%s250 + $0x78] sm:$0xff]
        %v268 = vld [vmem:[%s250 + $0x80] sm:$0xff]
        %v269 = vld [vmem:[%s250 + $0x88] sm:$0xff]
        %v270 = vld [vmem:[%s250 + $0x90] sm:$0xff]
        %v271 = vld [vmem:[%s250 + $0x98] sm:$0xff]
        %v272 = vld [vmem:[%s250 + $0xa0] sm:$0xff]
        %v273 = vld [vmem:[%s250 + $0xa8] sm:$0xff]
        %v274 = vld [vmem:[%s250 + $0xb0] sm:$0xff]
        %v275 = vld [vmem:[%s250 + $0xb8] sm:$0xff]
        %v276 = vld [vmem:[%s250 + $0xc0] sm:$0xff]
        %v277 = vld [vmem:[%s250 + $0xc8] sm:$0xff]
        %v278 = vld [vmem:[%s250 + $0xd0] sm:$0xff]
        %v279 = vld [vmem:[%s250 + $0xd8] sm:$0xff]
        %v280 = vld [vmem:[%s250 + $0xe0] sm:$0xff]
        %v281 = vld [vmem:[%s250 + $0xe8] sm:$0xff]
        %v282 = vld [vmem:[%s1] sm:$0xf]
        %vm283 = vcmask 31744
        %v285 = vsel %vm283, %v252, 0
        %v288 = vsel %vm283, %v253, 0
        %v291 = vsel %vm283, %v254, 0
        %v294 = vsel %vm283, %v255, 0
        %v297 = vsel %vm283, %v256, 0
        %v300 = vsel %vm283, %v257, 0
        %v303 = vsel %vm283, %v258, 0
        %v306 = vsel %vm283, %v259, 0
        %v309 = vsel %vm283, %v260, 0
        %v312 = vsel %vm283, %v261, 0
        %v315 = vsel %vm283, %v262, 0
        %v318 = vsel %vm283, %v263, 0
        %v321 = vsel %vm283, %v264, 0
        %v324 = vsel %vm283, %v265, 0
        %v327 = vsel %vm283, %v266, 0
        %v330 = vsel %vm283, %v267, 0
        %v333 = vsel %vm283, %v268, 0
        %v336 = vsel %vm283, %v269, 0
        %v339 = vsel %vm283, %v270, 0
        %v342 = vsel %vm283, %v271, 0
        %v345 = vsel %vm283, %v272, 0
        %v348 = vsel %vm283, %v273, 0
        %v351 = vsel %vm283, %v274, 0
        %v354 = vsel %vm283, %v275, 0
        %v357 = vsel %vm283, %v276, 0
        %v360 = vsel %vm283, %v277, 0
        %v363 = vsel %vm283, %v278, 0
        %v366 = vsel %vm283, %v279, 0
        %v369 = vsel %vm283, %v280, 0
        %v372 = vsel %vm283, %v281, 0
        %vm374 = vcmask 1043456
        %v376 = vsel %vm374, %v282, 0
        %378 = vmatprep.subr.mxu0 0.0
        %379 = vmatpush1.msra.mxu0 %v376
        %380 = vmatprep.subr.mxu0 0.0
        %381 = vmatpush1.msra.mxu0 0.0
        %382 = vmatprep.subr.mxu0 0.0
        %383 = vmatpush1.msra.mxu0 0.0
        %384 = vmatprep.subr.mxu0 0.0
        %385 = vmatpush1.msra.mxu0 0.0
        %386 = vmatprep.subr.mxu0 0.0
        %387 = vmatpush1.msra.mxu0 0.0
        %388 = vmatprep.subr.mxu0 0.0
        %389 = vmatpush1.msra.mxu0 0.0
        %390 = vmatprep.subr.mxu0 0.0
        %391 = vmatpush1.msra.mxu0 0.0
        %392 = vmatprep.subr.mxu0 0.0
        %393 = vmatpush1.msra.mxu0 0.0
        %394 = vmatprep.subr.mxu0 0.0
        %395 = vmatpush1.msra.mxu0 0.0
        %396 = vmatprep.subr.mxu0 0.0
        %397 = vmatpush1.msra.mxu0 0.0
        %398 = vmatprep.subr.mxu0 0.0
        %399 = vmatpush1.msra.mxu0 0.0
        %400 = vmatprep.subr.mxu0 0.0
        %401 = vmatpush1.msra.mxu0 0.0
        %402 = vmatprep.subr.mxu0 0.0
        %403 = vmatpush1.msra.mxu0 0.0
        %404 = vmatprep.subr.mxu0 0.0
        %405 = vmatpush1.msra.mxu0 0.0
        %406 = vmatprep.subr.mxu0 0.0
        %407 = vmatpush1.msra.mxu0 0.0
        %408 = vmatprep.subr.mxu0 0.0
        %409 = vmatpush1.msra.mxu0 0.0
        %410 = vmatprep.subr.mxu0 0.0
        %411 = vmatpush1.msra.mxu0 0.0
        %412 = vmatprep.subr.mxu0 0.0
        %413 = vmatpush1.msra.mxu0 0.0
        %414 = vmatprep.subr.mxu0 0.0
        %415 = vmatpush1.msra.mxu0 0.0
        %416 = vmatprep.subr.mxu0 0.0
        %417 = vmatpush1.msra.mxu0 0.0
        %418 = vmatprep.subr.mxu0 0.0
        %419 = vmatpush1.msra.mxu0 0.0
        %420 = vmatprep.subr.mxu0 0.0
        %421 = vmatpush1.msra.mxu0 0.0
        %422 = vmatprep.subr.mxu0 0.0
        %423 = vmatpush1.msra.mxu0 0.0
        %424 = vmatprep.subr.mxu0 0.0
        %425 = vmatpush1.msra.mxu0 0.0
        %426 = vmatprep.subr.mxu0 0.0
        %427 = vmatpush1.msra.mxu0 0.0
        %428 = vmatprep.subr.mxu0 0.0
        %429 = vmatpush1.msra.mxu0 0.0
        %430 = vmatprep.subr.mxu0 0.0
        %431 = vmatpush1.msra.mxu0 0.0
        %432 = vmatprep.subr.mxu0 0.0
        %433 = vmatpush1.msra.mxu0 0.0
        %434 = vmatprep.subr.mxu0 0.0
        %435 = vmatpush1.msra.mxu0 0.0
        %436 = vmatprep.subr.mxu0 0.0
        %437 = vmatpush1.msra.mxu0 0.0
        %438 = vmatprep.subr.mxu0 0.0
        %439 = vmatpush1.msra.mxu0 0.0
        %440 = vmatprep.subr.mxu0 0.0
        %441 = vmatpush1.msra.mxu0 0.0
        %442 = vmatprep.mubr.f32.mxu0 0.0
        %443 = vmatmul.mubr.f32.gmra.mrb[0].mxu0 %v285
        %v444 = vpop.f32.mrb[0].mxu0
        %v445 = vadd.f32 0.0, %v444
        %v446 = vpop.f32.mrb[0].mxu0
        %447 = vmatprep.mubr.f32.mxu0 0.0
        %448 = vmatmul.mubr.f32.gmra.mrb[0].mxu0 %v288
        %v449 = vpop.f32.mrb[0].mxu0
        %v450 = vadd.f32 0.0, %v449
        %v451 = vpop.f32.mrb[0].mxu0
        %452 = vmatprep.mubr.f32.mxu0 0.0
        %453 = vmatmul.mubr.f32.gmra.mrb[0].mxu0 %v291
        %v454 = vpop.f32.mrb[0].mxu0
        %v455 = vadd.f32 0.0, %v454
        %v456 = vpop.f32.mrb[0].mxu0
        %457 = vmatprep.mubr.f32.mxu0 0.0
        %458 = vmatmul.mubr.f32.gmra.mrb[0].mxu0 %v294
        %v459 = vpop.f32.mrb[0].mxu0
        %v460 = vadd.f32 0.0, %v459
        %v461 = vpop.f32.mrb[0].mxu0
        %462 = vmatprep.mubr.f32.mxu0 0.0
        %463 = vmatmul.mubr.f32.gmra.mrb[0].mxu0 %v297
        %v464 = vpop.f32.mrb[0].mxu0
        %v465 = vadd.f32 0.0, %v464
        %v466 = vpop.f32.mrb[0].mxu0
        %467 = vmatprep.mubr.f32.mxu0 0.0
        %468 = vmatmul.mubr.f32.gmra.mrb[0].mxu0 %v300
        %v469 = vpop.f32.mrb[0].mxu0
        %v470 = vadd.f32 0.0, %v469
        %v471 = vpop.f32.mrb[0].mxu0
        %472 = vmatprep.mubr.f32.mxu0 0.0
        %473 = vmatmul.mubr.f32.gmra.mrb[0].mxu0 %v303
        %v474 = vpop.f32.mrb[0].mxu0
        %v475 = vadd.f32 0.0, %v474
        %v476 = vpop.f32.mrb[0].mxu0
        %477 = vmatprep.mubr.f32.mxu0 0.0
        %478 = vmatmul.mubr.f32.gmra.mrb[0].mxu0 %v306
        %v479 = vpop.f32.mrb[0].mxu0
        %v480 = vadd.f32 0.0, %v479
        %v481 = vpop.f32.mrb[0].mxu0
        %482 = vmatprep.mubr.f32.mxu0 0.0
        %483 = vmatmul.mubr.f32.gmra.mrb[0].mxu0 %v309
        %v484 = vpop.f32.mrb[0].mxu0
        %v485 = vadd.f32 0.0, %v484
        %v486 = vpop.f32.mrb[0].mxu0
        %487 = vmatprep.mubr.f32.mxu0 0.0
        %488 = vmatmul.mubr.f32.gmra.mrb[0].mxu0 %v312
        %v489 = vpop.f32.mrb[0].mxu0
        %v490 = vadd.f32 0.0, %v489
        %v491 = vpop.f32.mrb[0].mxu0
        %492 = vmatprep.mubr.f32.mxu0 0.0
        %493 = vmatmul.mubr.f32.gmra.mrb[0].mxu0 %v315
        %v494 = vpop.f32.mrb[0].mxu0
        %v495 = vadd.f32 0.0, %v494
        %v496 = vpop.f32.mrb[0].mxu0
        %497 = vmatprep.mubr.f32.mxu0 0.0
        %498 = vmatmul.mubr.f32.gmra.mrb[0].mxu0 %v318
        %v499 = vpop.f32.mrb[0].mxu0
        %v500 = vadd.f32 0.0, %v499
        %v501 = vpop.f32.mrb[0].mxu0
        %502 = vmatprep.mubr.f32.mxu0 0.0
        %503 = vmatmul.mubr.f32.gmra.mrb[0].mxu0 %v321
        %v504 = vpop.f32.mrb[0].mxu0
        %v505 = vadd.f32 0.0, %v504
        %v506 = vpop.f32.mrb[0].mxu0
        %507 = vmatprep.mubr.f32.mxu0 0.0
        %508 = vmatmul.mubr.f32.gmra.mrb[0].mxu0 %v324
        %v509 = vpop.f32.mrb[0].mxu0
        %v510 = vadd.f32 0.0, %v509
        %v511 = vpop.f32.mrb[0].mxu0
        %512 = vmatprep.mubr.f32.mxu0 0.0
        %513 = vmatmul.mubr.f32.gmra.mrb[0].mxu0 %v327
        %v514 = vpop.f32.mrb[0].mxu0
        %v515 = vadd.f32 0.0, %v514
        %v516 = vpop.f32.mrb[0].mxu0
        %517 = vmatprep.mubr.f32.mxu0 0.0
        %518 = vmatmul.mubr.f32.gmra.mrb[0].mxu0 %v330
        %v519 = vpop.f32.mrb[0].mxu0
        %v520 = vadd.f32 0.0, %v519
        %v521 = vpop.f32.mrb[0].mxu0
        %522 = vmatprep.mubr.f32.mxu0 0.0
        %523 = vmatmul.mubr.f32.gmra.mrb[0].mxu0 %v333
        %v524 = vpop.f32.mrb[0].mxu0
        %v525 = vadd.f32 0.0, %v524
        %v526 = vpop.f32.mrb[0].mxu0
        %527 = vmatprep.mubr.f32.mxu0 0.0
        %528 = vmatmul.mubr.f32.gmra.mrb[0].mxu0 %v336
        %v529 = vpop.f32.mrb[0].mxu0
        %v530 = vadd.f32 0.0, %v529
        %v531 = vpop.f32.mrb[0].mxu0
        %532 = vmatprep.mubr.f32.mxu0 0.0
        %533 = vmatmul.mubr.f32.gmra.mrb[0].mxu0 %v339
        %v534 = vpop.f32.mrb[0].mxu0
        %v535 = vadd.f32 0.0, %v534
        %v536 = vpop.f32.mrb[0].mxu0
        %537 = vmatprep.mubr.f32.mxu0 0.0
        %538 = vmatmul.mubr.f32.gmra.mrb[0].mxu0 %v342
        %v539 = vpop.f32.mrb[0].mxu0
        %v540 = vadd.f32 0.0, %v539
        %v541 = vpop.f32.mrb[0].mxu0
        %542 = vmatprep.mubr.f32.mxu0 0.0
        %543 = vmatmul.mubr.f32.gmra.mrb[0].mxu0 %v345
        %v544 = vpop.f32.mrb[0].mxu0
        %v545 = vadd.f32 0.0, %v544
        %v546 = vpop.f32.mrb[0].mxu0
        %547 = vmatprep.mubr.f32.mxu0 0.0
        %548 = vmatmul.mubr.f32.gmra.mrb[0].mxu0 %v348
        %v549 = vpop.f32.mrb[0].mxu0
        %v550 = vadd.f32 0.0, %v549
        %v551 = vpop.f32.mrb[0].mxu0
        %552 = vmatprep.mubr.f32.mxu0 0.0
        %553 = vmatmul.mubr.f32.gmra.mrb[0].mxu0 %v351
        %v554 = vpop.f32.mrb[0].mxu0
        %v555 = vadd.f32 0.0, %v554
        %v556 = vpop.f32.mrb[0].mxu0
        %557 = vmatprep.mubr.f32.mxu0 0.0
        %558 = vmatmul.mubr.f32.gmra.mrb[0].mxu0 %v354
        %v559 = vpop.f32.mrb[0].mxu0
        %v560 = vadd.f32 0.0, %v559
        %v561 = vpop.f32.mrb[0].mxu0
        %562 = vmatprep.mubr.f32.mxu0 0.0
        %563 = vmatmul.mubr.f32.gmra.mrb[0].mxu0 %v357
        %v564 = vpop.f32.mrb[0].mxu0
        %v565 = vadd.f32 0.0, %v564
        %v566 = vpop.f32.mrb[0].mxu0
        %567 = vmatprep.mubr.f32.mxu0 0.0
        %568 = vmatmul.mubr.f32.gmra.mrb[0].mxu0 %v360
        %v569 = vpop.f32.mrb[0].mxu0
        %v570 = vadd.f32 0.0, %v569
        %v571 = vpop.f32.mrb[0].mxu0
        %572 = vmatprep.mubr.f32.mxu0 0.0
        %573 = vmatmul.mubr.f32.gmra.mrb[0].mxu0 %v363
        %v574 = vpop.f32.mrb[0].mxu0
        %v575 = vadd.f32 0.0, %v574
        %v576 = vpop.f32.mrb[0].mxu0
        %577 = vmatprep.mubr.f32.mxu0 0.0
        %578 = vmatmul.mubr.f32.gmra.mrb[0].mxu0 %v366
        %v579 = vpop.f32.mrb[0].mxu0
        %v580 = vadd.f32 0.0, %v579
        %v581 = vpop.f32.mrb[0].mxu0
        %582 = vmatprep.mubr.f32.mxu0 0.0
        %583 = vmatmul.mubr.f32.gmra.mrb[0].mxu0 %v369
        %v584 = vpop.f32.mrb[0].mxu0
        %v585 = vadd.f32 0.0, %v584
        %v586 = vpop.f32.mrb[0].mxu0
        %587 = vmatprep.mubr.f32.mxu0 0.0
        %588 = vmatmul.mubr.f32.gmra.mrb[0].mxu0 %v372
        %v589 = vpop.f32.mrb[0].mxu0
        %v590 = vadd.f32 0.0, %v589
        %v591 = vpop.f32.mrb[0].mxu0
        %592 = vdwg.mxu0
        %v593 = vmax.f32 %v445, 0.0
        %v594 = vmax.f32 %v450, 0.0
        %v595 = vmax.f32 %v455, 0.0
        %v596 = vmax.f32 %v460, 0.0
        %v597 = vmax.f32 %v465, 0.0
        %v598 = vmax.f32 %v470, 0.0
        %v599 = vmax.f32 %v475, 0.0
        %v600 = vmax.f32 %v480, 0.0
        %v601 = vmax.f32 %v485, 0.0
        %v602 = vmax.f32 %v490, 0.0
        %v603 = vmax.f32 %v495, 0.0
        %v604 = vmax.f32 %v500, 0.0
        %v605 = vmax.f32 %v505, 0.0
        %v606 = vmax.f32 %v510, 0.0
        %v607 = vmax.f32 %v515, 0.0
        %v608 = vmax.f32 %v520, 0.0
        %v609 = vmax.f32 %v525, 0.0
        %v610 = vmax.f32 %v530, 0.0
        %v611 = vmax.f32 %v535, 0.0
        %v612 = vmax.f32 %v540, 0.0
        %v613 = vmax.f32 %v545, 0.0
        %v614 = vmax.f32 %v550, 0.0
        %v615 = vmax.f32 %v555, 0.0
        %v616 = vmax.f32 %v560, 0.0
        %v617 = vmax.f32 %v565, 0.0
        %v618 = vmax.f32 %v570, 0.0
        %v619 = vmax.f32 %v575, 0.0
        %v620 = vmax.f32 %v580, 0.0
        %v621 = vmax.f32 %v585, 0.0
        %v622 = vmax.f32 %v590, 0.0
        %v623 = vld [vmem:[%s2] sm:$0xff]
        %v624 = vld [vmem:[%s2 + $0x8] sm:$0xff]
        %v625 = vld [vmem:[%s2 + $0x10] sm:$0xff]
        %v626 = vld [vmem:[%s2 + $0x18] sm:$0xff]
        %v627 = vld [vmem:[%s2 + $0x20] sm:$0xff]
        %v628 = vld [vmem:[%s2 + $0x28] sm:$0xff]
        %v629 = vld [vmem:[%s2 + $0x30] sm:$0xff]
        %v630 = vld [vmem:[%s2 + $0x38] sm:$0xff]
        %v631 = vld [vmem:[%s2 + $0x40] sm:$0xff]
        %vm656 = vcmask 1046528
        %v657 = vrot.slane %v593, 1
        %v658 = vrot.slane %v594, 1
        %v659 = vsel %vm656, %v657, %v658
        %v660 = vrot.slane %v595, 1
        %v661 = vsel %vm656, %v658, %v660
        %v662 = vrot.slane %v596, 1
        %v663 = vrot.slane %v597, 1
        %v664 = vsel %vm656, %v662, %v663
        %v665 = vrot.slane %v598, 1
        %v666 = vsel %vm656, %v663, %v665
        %v667 = vrot.slane %v599, 1
        %v668 = vrot.slane %v600, 1
        %v669 = vsel %vm656, %v667, %v668
        %v670 = vrot.slane %v601, 1
        %v671 = vsel %vm656, %v668, %v670
        %v672 = vrot.slane %v602, 1
        %v673 = vrot.slane %v603, 1
        %v674 = vsel %vm656, %v672, %v673
        %v675 = vrot.slane %v604, 1
        %v676 = vsel %vm656, %v673, %v675
        %v677 = vrot.slane %v605, 1
        %v678 = vrot.slane %v606, 1
        %v679 = vsel %vm656, %v677, %v678
        %v680 = vrot.slane %v607, 1
        %v681 = vsel %vm656, %v678, %v680
        %v682 = vrot.slane %v608, 1
        %v683 = vrot.slane %v609, 1
        %v684 = vsel %vm656, %v682, %v683
        %v685 = vrot.slane %v610, 1
        %v686 = vsel %vm656, %v683, %v685
        %v687 = vrot.slane %v611, 1
        %v688 = vrot.slane %v612, 1
        %v689 = vsel %vm656, %v687, %v688
        %v690 = vrot.slane %v613, 1
        %v691 = vsel %vm656, %v688, %v690
        %v692 = vrot.slane %v614, 1
        %v693 = vrot.slane %v615, 1
        %v694 = vsel %vm656, %v692, %v693
        %v695 = vrot.slane %v616, 1
        %v696 = vsel %vm656, %v693, %v695
        %vm697 = vcmask 64512
        %v698 = vsel %vm697, %v659, 0
        %v700 = vsel %vm697, %v661, 0
        %v702 = vsel %vm697, %v664, 0
        %v704 = vsel %vm697, %v666, 0
        %v706 = vsel %vm697, %v669, 0
        %v708 = vsel %vm697, %v671, 0
        %v710 = vsel %vm697, %v674, 0
        %v712 = vsel %vm697, %v676, 0
        %v714 = vsel %vm697, %v679, 0
        %v716 = vsel %vm697, %v681, 0
        %v718 = vsel %vm697, %v684, 0
        %v720 = vsel %vm697, %v686, 0
        %v722 = vsel %vm697, %v689, 0
        %v724 = vsel %vm697, %v691, 0
        %v726 = vsel %vm697, %v694, 0
        %v728 = vsel %vm697, %v696, 0
        %730 = vmatprep.subr.mxu0 0.0
        %731 = vmatpush1.msra.mxu0 %v624
        %732 = vmatprep.subr.mxu0 0.0
        %733 = vmatpush1.msra.mxu0 0.0
        %734 = vmatprep.subr.mxu0 0.0
        %735 = vmatpush1.msra.mxu0 0.0
        %736 = vmatprep.subr.mxu0 0.0
        %737 = vmatpush1.msra.mxu0 0.0
        %738 = vmatprep.subr.mxu0 0.0
        %739 = vmatpush1.msra.mxu0 0.0
        %740 = vmatprep.subr.mxu0 0.0
        %741 = vmatpush1.msra.mxu0 0.0
        %742 = vmatprep.subr.mxu0 0.0
        %743 = vmatpush1.msra.mxu0 0.0
        %744 = vmatprep.subr.mxu0 0.0
        %745 = vmatpush1.msra.mxu0 0.0
        %746 = vmatprep.subr.mxu0 0.0
        %747 = vmatpush1.msra.mxu0 0.0
        %748 = vmatprep.subr.mxu0 0.0
        %749 = vmatpush1.msra.mxu0 0.0
        %750 = vmatprep.subr.mxu0 0.0
        %751 = vmatpush1.msra.mxu0 0.0
        %752 = vmatprep.subr.mxu0 0.0
        %753 = vmatpush1.msra.mxu0 0.0
        %754 = vmatprep.subr.mxu0 0.0
        %755 = vmatpush1.msra.mxu0 0.0
        %756 = vmatprep.subr.mxu0 0.0
        %757 = vmatpush1.msra.mxu0 0.0
        %758 = vmatprep.subr.mxu0 0.0
        %759 = vmatpush1.msra.mxu0 0.0
        %760 = vmatprep.subr.mxu0 0.0
        %761 = vmatpush1.msra.mxu0 0.0
        %762 = vmatprep.subr.mxu0 0.0
        %763 = vmatpush1.msra.mxu0 0.0
        %764 = vmatprep.subr.mxu0 0.0
        %765 = vmatpush1.msra.mxu0 0.0
        %766 = vmatprep.subr.mxu0 0.0
        %767 = vmatpush1.msra.mxu0 0.0
        %768 = vmatprep.subr.mxu0 0.0
        %769 = vmatpush1.msra.mxu0 0.0
        %770 = vmatprep.subr.mxu0 0.0
        %771 = vmatpush1.msra.mxu0 0.0
        %772 = vmatprep.subr.mxu0 0.0
        %773 = vmatpush1.msra.mxu0 0.0
        %774 = vmatprep.subr.mxu0 0.0
        %775 = vmatpush1.msra.mxu0 0.0
        %776 = vmatprep.subr.mxu0 0.0
        %777 = vmatpush1.msra.mxu0 0.0
        %778 = vmatprep.subr.mxu0 0.0
        %779 = vmatpush1.msra.mxu0 0.0
        %780 = vmatprep.subr.mxu0 0.0
        %781 = vmatpush1.msra.mxu0 0.0
        %782 = vmatprep.subr.mxu0 0.0
        %783 = vmatpush1.msra.mxu0 0.0
        %784 = vmatprep.subr.mxu0 0.0
        %785 = vmatpush1.msra.mxu0 0.0
        %786 = vmatprep.subr.mxu0 0.0
        %787 = vmatpush1.msra.mxu0 0.0
        %788 = vmatprep.subr.mxu0 0.0
        %789 = vmatpush1.msra.mxu0 0.0
        %790 = vmatprep.subr.mxu0 0.0
        %791 = vmatpush1.msra.mxu0 0.0
        %792 = vmatprep.subr.mxu0 0.0
        %793 = vmatpush1.msra.mxu0 0.0
        %794 = vmatprep.mubr.f32.mxu0 0.0
        %795 = vmatmul.mubr.f32.gmra.mrb[0].mxu0 %v698
        %v796 = vpop.f32.mrb[0].mxu0
        %v797 = vadd.f32 0.0, %v796
        %v798 = vpop.f32.mrb[0].mxu0
        %799 = vmatprep.mubr.f32.mxu0 0.0
        %800 = vmatmul.mubr.f32.gmra.mrb[0].mxu0 %v700
        %v801 = vpop.f32.mrb[0].mxu0
        %v802 = vadd.f32 0.0, %v801
        %v803 = vpop.f32.mrb[0].mxu0
        %804 = vmatprep.mubr.f32.mxu0 0.0
        %805 = vmatmul.mubr.f32.gmra.mrb[0].mxu0 %v702
        %v806 = vpop.f32.mrb[0].mxu0
        %v807 = vadd.f32 0.0, %v806
        %v808 = vpop.f32.mrb[0].mxu0
        %809 = vmatprep.mubr.f32.mxu0 0.0
        %810 = vmatmul.mubr.f32.gmra.mrb[0].mxu0 %v704
        %v811 = vpop.f32.mrb[0].mxu0
        %v812 = vadd.f32 0.0, %v811
        %v813 = vpop.f32.mrb[0].mxu0
        %814 = vmatprep.mubr.f32.mxu0 0.0
        %815 = vmatmul.mubr.f32.gmra.mrb[0].mxu0 %v706
        %v816 = vpop.f32.mrb[0].mxu0
        %v817 = vadd.f32 0.0, %v816
        %v818 = vpop.f32.mrb[0].mxu0
        %819 = vmatprep.mubr.f32.mxu0 0.0
        %820 = vmatmul.mubr.f32.gmra.mrb[0].mxu0 %v708
        %v821 = vpop.f32.mrb[0].mxu0
        %v822 = vadd.f32 0.0, %v821
        %v823 = vpop.f32.mrb[0].mxu0
        %824 = vmatprep.mubr.f32.mxu0 0.0
        %825 = vmatmul.mubr.f32.gmra.mrb[0].mxu0 %v710
        %v826 = vpop.f32.mrb[0].mxu0
        %v827 = vadd.f32 0.0, %v826
        %v828 = vpop.f32.mrb[0].mxu0
        %829 = vmatprep.mubr.f32.mxu0 0.0
        %830 = vmatmul.mubr.f32.gmra.mrb[0].mxu0 %v712
        %v831 = vpop.f32.mrb[0].mxu0
        %v832 = vadd.f32 0.0, %v831
        %v833 = vpop.f32.mrb[0].mxu0
        %834 = vmatprep.mubr.f32.mxu0 0.0
        %835 = vmatmul.mubr.f32.gmra.mrb[0].mxu0 %v714
        %v836 = vpop.f32.mrb[0].mxu0
        %v837 = vadd.f32 0.0, %v836
        %v838 = vpop.f32.mrb[0].mxu0
        %839 = vmatprep.mubr.f32.mxu0 0.0
        %840 = vmatmul.mubr.f32.gmra.mrb[0].mxu0 %v716
        %v841 = vpop.f32.mrb[0].mxu0
        %v842 = vadd.f32 0.0, %v841
        %v843 = vpop.f32.mrb[0].mxu0
        %844 = vmatprep.mubr.f32.mxu0 0.0
        %845 = vmatmul.mubr.f32.gmra.mrb[0].mxu0 %v718
        %v846 = vpop.f32.mrb[0].mxu0
        %v847 = vadd.f32 0.0, %v846
        %v848 = vpop.f32.mrb[0].mxu0
        %849 = vmatprep.mubr.f32.mxu0 0.0
        %850 = vmatmul.mubr.f32.gmra.mrb[0].mxu0 %v720
        %v851 = vpop.f32.mrb[0].mxu0
        %v852 = vadd.f32 0.0, %v851
        %v853 = vpop.f32.mrb[0].mxu0
        %854 = vmatprep.mubr.f32.mxu0 0.0
        %855 = vmatmul.mubr.f32.gmra.mrb[0].mxu0 %v722
        %v856 = vpop.f32.mrb[0].mxu0
        %v857 = vadd.f32 0.0, %v856
        %v858 = vpop.f32.mrb[0].mxu0
        %859 = vmatprep.mubr.f32.mxu0 0.0
        %860 = vmatmul.mubr.f32.gmra.mrb[0].mxu0 %v724
        %v861 = vpop.f32.mrb[0].mxu0
        %v862 = vadd.f32 0.0, %v861
        %v863 = vpop.f32.mrb[0].mxu0
        %864 = vmatprep.mubr.f32.mxu0 0.0
        %865 = vmatmul.mubr.f32.gmra.mrb[0].mxu0 %v726
        %v866 = vpop.f32.mrb[0].mxu0
        %v867 = vadd.f32 0.0, %v866
        %v868 = vpop.f32.mrb[0].mxu0
        %869 = vmatprep.mubr.f32.mxu0 0.0
        %870 = vmatmul.mubr.f32.gmra.mrb[0].mxu0 %v728
        %v871 = vpop.f32.mrb[0].mxu0
        %v872 = vadd.f32 0.0, %v871
        %v873 = vpop.f32.mrb[0].mxu0
        %874 = vdwg.mxu0
        %v875 = vsel %vm697, %v593, 0
        %v877 = vsel %vm697, %v594, 0
        %v879 = vsel %vm697, %v596, 0
        %v881 = vsel %vm697, %v597, 0
        %v883 = vsel %vm697, %v599, 0
        %v885 = vsel %vm697, %v600, 0
        %v887 = vsel %vm697, %v602, 0
        %v889 = vsel %vm697, %v603, 0
        %v891 = vsel %vm697, %v605, 0
        %v893 = vsel %vm697, %v606, 0
        %v895 = vsel %vm697, %v608, 0
        %v897 = vsel %vm697, %v609, 0
        %v899 = vsel %vm697, %v611, 0
        %v901 = vsel %vm697, %v612, 0
        %v903 = vsel %vm697, %v614, 0
        %v905 = vsel %vm697, %v615, 0
        %907 = vmatprep.subr.mxu0 0.0
        %908 = vmatpush1.msra.mxu0 %v623
        %909 = vmatprep.subr.mxu0 0.0
        %910 = vmatpush1.msra.mxu0 0.0
        %911 = vmatprep.subr.mxu0 0.0
        %912 = vmatpush1.msra.mxu0 0.0
        %913 = vmatprep.subr.mxu0 0.0
        %914 = vmatpush1.msra.mxu0 0.0
        %915 = vmatprep.subr.mxu0 0.0
        %916 = vmatpush1.msra.mxu0 0.0
        %917 = vmatprep.subr.mxu0 0.0
        %918 = vmatpush1.msra.mxu0 0.0
        %919 = vmatprep.subr.mxu0 0.0
        %920 = vmatpush1.msra.mxu0 0.0
        %921 = vmatprep.subr.mxu0 0.0
        %922 = vmatpush1.msra.mxu0 0.0
        %923 = vmatprep.subr.mxu0 0.0
        %924 = vmatpush1.msra.mxu0 0.0
        %925 = vmatprep.subr.mxu0 0.0
        %926 = vmatpush1.msra.mxu0 0.0
        %927 = vmatprep.subr.mxu0 0.0
        %928 = vmatpush1.msra.mxu0 0.0
        %929 = vmatprep.subr.mxu0 0.0
        %930 = vmatpush1.msra.mxu0 0.0
        %931 = vmatprep.subr.mxu0 0.0
        %932 = vmatpush1.msra.mxu0 0.0
        %933 = vmatprep.subr.mxu0 0.0
        %934 = vmatpush1.msra.mxu0 0.0
        %935 = vmatprep.subr.mxu0 0.0
        %936 = vmatpush1.msra.mxu0 0.0
        %937 = vmatprep.subr.mxu0 0.0
        %938 = vmatpush1.msra.mxu0 0.0
        %939 = vmatprep.subr.mxu0 0.0
        %940 = vmatpush1.msra.mxu0 0.0
        %941 = vmatprep.subr.mxu0 0.0
        %942 = vmatpush1.msra.mxu0 0.0
        %943 = vmatprep.subr.mxu0 0.0
        %944 = vmatpush1.msra.mxu0 0.0
        %945 = vmatprep.subr.mxu0 0.0
        %946 = vmatpush1.msra.mxu0 0.0
        %947 = vmatprep.subr.mxu0 0.0
        %948 = vmatpush1.msra.mxu0 0.0
        %949 = vmatprep.subr.mxu0 0.0
        %950 = vmatpush1.msra.mxu0 0.0
        %951 = vmatprep.subr.mxu0 0.0
        %952 = vmatpush1.msra.mxu0 0.0
        %953 = vmatprep.subr.mxu0 0.0
        %954 = vmatpush1.msra.mxu0 0.0
        %955 = vmatprep.subr.mxu0 0.0
        %956 = vmatpush1.msra.mxu0 0.0
        %957 = vmatprep.subr.mxu0 0.0
        %958 = vmatpush1.msra.mxu0 0.0
        %959 = vmatprep.subr.mxu0 0.0
        %960 = vmatpush1.msra.mxu0 0.0
        %961 = vmatprep.subr.mxu0 0.0
        %962 = vmatpush1.msra.mxu0 0.0
        %963 = vmatprep.subr.mxu0 0.0
        %964 = vmatpush1.msra.mxu0 0.0
        %965 = vmatprep.subr.mxu0 0.0
        %966 = vmatpush1.msra.mxu0 0.0
        %967 = vmatprep.subr.mxu0 0.0
        %968 = vmatpush1.msra.mxu0 0.0
        %969 = vmatprep.subr.mxu0 0.0
        %970 = vmatpush1.msra.mxu0 0.0
        %971 = vmatprep.mubr.f32.mxu0 0.0
        %972 = vmatmul.mubr.f32.gmra.mrb[0].mxu0 %v875
        %v973 = vpop.f32.mrb[0].mxu0
        %v974 = vadd.f32 %v797, %v973
        %v975 = vpop.f32.mrb[0].mxu0
        %976 = vmatprep.mubr.f32.mxu0 0.0
        %977 = vmatmul.mubr.f32.gmra.mrb[0].mxu0 %v877
        %v978 = vpop.f32.mrb[0].mxu0
        %v979 = vadd.f32 %v802, %v978
        %v980 = vpop.f32.mrb[0].mxu0
        %981 = vmatprep.mubr.f32.mxu0 0.0
        %982 = vmatmul.mubr.f32.gmra.mrb[0].mxu0 %v879
        %v983 = vpop.f32.mrb[0].mxu0
        %v984 = vadd.f32 %v807, %v983
        %v985 = vpop.f32.mrb[0].mxu0
        %986 = vmatprep.mubr.f32.mxu0 0.0
        %987 = vmatmul.mubr.f32.gmra.mrb[0].mxu0 %v881
        %v988 = vpop.f32.mrb[0].mxu0
        %v989 = vadd.f32 %v812, %v988
        %v990 = vpop.f32.mrb[0].mxu0
        %991 = vmatprep.mubr.f32.mxu0 0.0
        %992 = vmatmul.mubr.f32.gmra.mrb[0].mxu0 %v883
        %v993 = vpop.f32.mrb[0].mxu0
        %v994 = vadd.f32 %v817, %v993
        %v995 = vpop.f32.mrb[0].mxu0
        %996 = vmatprep.mubr.f32.mxu0 0.0
        %997 = vmatmul.mubr.f32.gmra.mrb[0].mxu0 %v885
        %v998 = vpop.f32.mrb[0].mxu0
        %v999 = vadd.f32 %v822, %v998
        %v1000 = vpop.f32.mrb[0].mxu0
        %1001 = vmatprep.mubr.f32.mxu0 0.0
        %1002 = vmatmul.mubr.f32.gmra.mrb[0].mxu0 %v887
        %v1003 = vpop.f32.mrb[0].mxu0
        %v1004 = vadd.f32 %v827, %v1003
        %v1005 = vpop.f32.mrb[0].mxu0
        %1006 = vmatprep.mubr.f32.mxu0 0.0
        %1007 = vmatmul.mubr.f32.gmra.mrb[0].mxu0 %v889
        %v1008 = vpop.f32.mrb[0].mxu0
        %v1009 = vadd.f32 %v832, %v1008
        %v1010 = vpop.f32.mrb[0].mxu0
        %1011 = vmatprep.mubr.f32.mxu0 0.0
        %1012 = vmatmul.mubr.f32.gmra.mrb[0].mxu0 %v891
        %v1013 = vpop.f32.mrb[0].mxu0
        %v1014 = vadd.f32 %v837, %v1013
        %v1015 = vpop.f32.mrb[0].mxu0
        %1016 = vmatprep.mubr.f32.mxu0 0.0
        %1017 = vmatmul.mubr.f32.gmra.mrb[0].mxu0 %v893
        %v1018 = vpop.f32.mrb[0].mxu0
        %v1019 = vadd.f32 %v842, %v1018
        %v1020 = vpop.f32.mrb[0].mxu0
        %1021 = vmatprep.mubr.f32.mxu0 0.0
        %1022 = vmatmul.mubr.f32.gmra.mrb[0].mxu0 %v895
        %v1023 = vpop.f32.mrb[0].mxu0
        %v1024 = vadd.f32 %v847, %v1023
        %v1025 = vpop.f32.mrb[0].mxu0
        %1026 = vmatprep.mubr.f32.mxu0 0.0
        %1027 = vmatmul.mubr.f32.gmra.mrb[0].mxu0 %v897
        %v1028 = vpop.f32.mrb[0].mxu0
        %v1029 = vadd.f32 %v852, %v1028
        %v1030 = vpop.f32.mrb[0].mxu0
        %1031 = vmatprep.mubr.f32.mxu0 0.0
        %1032 = vmatmul.mubr.f32.gmra.mrb[0].mxu0 %v899
        %v1033 = vpop.f32.mrb[0].mxu0
        %v1034 = vadd.f32 %v857, %v1033
        %v1035 = vpop.f32.mrb[0].mxu0
        %1036 = vmatprep.mubr.f32.mxu0 0.0
        %1037 = vmatmul.mubr.f32.gmra.mrb[0].mxu0 %v901
        %v1038 = vpop.f32.mrb[0].mxu0
        %v1039 = vadd.f32 %v862, %v1038
        %v1040 = vpop.f32.mrb[0].mxu0
        %1041 = vmatprep.mubr.f32.mxu0 0.0
        %1042 = vmatmul.mubr.f32.gmra.mrb[0].mxu0 %v903
        %v1043 = vpop.f32.mrb[0].mxu0
        %v1044 = vadd.f32 %v867, %v1043
        %v1045 = vpop.f32.mrb[0].mxu0
        %1046 = vmatprep.mubr.f32.mxu0 0.0
        %1047 = vmatmul.mubr.f32.gmra.mrb[0].mxu0 %v905
        %v1048 = vpop.f32.mrb[0].mxu0
        %v1049 = vadd.f32 %v872, %v1048
        %v1050 = vpop.f32.mrb[0].mxu0
        %1051 = vdwg.mxu0
        %vm1052 = vcmask 1045504
        %v1053 = vrot.slane %v593, 2
        %v1054 = vrot.slane %v594, 2
        %v1055 = vsel %vm1052, %v1053, %v1054
        %v1056 = vrot.slane %v595, 2
        %v1057 = vsel %vm1052, %v1054, %v1056
        %v1058 = vrot.slane %v596, 2
        %v1059 = vrot.slane %v597, 2
        %v1060 = vsel %vm1052, %v1058, %v1059
        %v1061 = vrot.slane %v598, 2
        %v1062 = vsel %vm1052, %v1059, %v1061
        %v1063 = vrot.slane %v599, 2
        %v1064 = vrot.slane %v600, 2
        %v1065 = vsel %vm1052, %v1063, %v1064
        %v1066 = vrot.slane %v601, 2
        %v1067 = vsel %vm1052, %v1064, %v1066
        %v1068 = vrot.slane %v602, 2
        %v1069 = vrot.slane %v603, 2
        %v1070 = vsel %vm1052, %v1068, %v1069
        %v1071 = vrot.slane %v604, 2
        %v1072 = vsel %vm1052, %v1069, %v1071
        %v1073 = vrot.slane %v605, 2
        %v1074 = vrot.slane %v606, 2
        %v1075 = vsel %vm1052, %v1073, %v1074
        %v1076 = vrot.slane %v607, 2
        %v1077 = vsel %vm1052, %v1074, %v1076
        %v1078 = vrot.slane %v608, 2
        %v1079 = vrot.slane %v609, 2
        %v1080 = vsel %vm1052, %v1078, %v1079
        %v1081 = vrot.slane %v610, 2
        %v1082 = vsel %vm1052, %v1079, %v1081
        %v1083 = vrot.slane %v611, 2
        %v1084 = vrot.slane %v612, 2
        %v1085 = vsel %vm1052, %v1083, %v1084
        %v1086 = vrot.slane %v613, 2
        %v1087 = vsel %vm1052, %v1084, %v1086
        %v1088 = vrot.slane %v614, 2
        %v1089 = vrot.slane %v615, 2
        %v1090 = vsel %vm1052, %v1088, %v1089
        %v1091 = vrot.slane %v616, 2
        %v1092 = vsel %vm1052, %v1089, %v1091
        %v1093 = vsel %vm697, %v1055, 0
        %v1095 = vsel %vm697, %v1057, 0
        %v1097 = vsel %vm697, %v1060, 0
        %v1099 = vsel %vm697, %v1062, 0
        %v1101 = vsel %vm697, %v1065, 0
        %v1103 = vsel %vm697, %v1067, 0
        %v1105 = vsel %vm697, %v1070, 0
        %v1107 = vsel %vm697, %v1072, 0
        %v1109 = vsel %vm697, %v1075, 0
        %v1111 = vsel %vm697, %v1077, 0
        %v1113 = vsel %vm697, %v1080, 0
        %v1115 = vsel %vm697, %v1082, 0
        %v1117 = vsel %vm697, %v1085, 0
        %v1119 = vsel %vm697, %v1087, 0
        %v1121 = vsel %vm697, %v1090, 0
        %v1123 = vsel %vm697, %v1092, 0
        %1125 = vmatprep.subr.mxu0 0.0
        %1126 = vmatpush1.msra.mxu0 %v625
        %1127 = vmatprep.subr.mxu0 0.0
        %1128 = vmatpush1.msra.mxu0 0.0
        %1129 = vmatprep.subr.mxu0 0.0
        %1130 = vmatpush1.msra.mxu0 0.0
        %1131 = vmatprep.subr.mxu0 0.0
        %1132 = vmatpush1.msra.mxu0 0.0
        %1133 = vmatprep.subr.mxu0 0.0
        %1134 = vmatpush1.msra.mxu0 0.0
        %1135 = vmatprep.subr.mxu0 0.0
        %1136 = vmatpush1.msra.mxu0 0.0
        %1137 = vmatprep.subr.mxu0 0.0
        %1138 = vmatpush1.msra.mxu0 0.0
        %1139 = vmatprep.subr.mxu0 0.0
        %1140 = vmatpush1.msra.mxu0 0.0
        %1141 = vmatprep.subr.mxu0 0.0
        %1142 = vmatpush1.msra.mxu0 0.0
        %1143 = vmatprep.subr.mxu0 0.0
        %1144 = vmatpush1.msra.mxu0 0.0
        %1145 = vmatprep.subr.mxu0 0.0
        %1146 = vmatpush1.msra.mxu0 0.0
        %1147 = vmatprep.subr.mxu0 0.0
        %1148 = vmatpush1.msra.mxu0 0.0
        %1149 = vmatprep.subr.mxu0 0.0
        %1150 = vmatpush1.msra.mxu0 0.0
        %1151 = vmatprep.subr.mxu0 0.0
        %1152 = vmatpush1.msra.mxu0 0.0
        %1153 = vmatprep.subr.mxu0 0.0
        %1154 = vmatpush1.msra.mxu0 0.0
        %1155 = vmatprep.subr.mxu0 0.0
        %1156 = vmatpush1.msra.mxu0 0.0
        %1157 = vmatprep.subr.mxu0 0.0
        %1158 = vmatpush1.msra.mxu0 0.0
        %1159 = vmatprep.subr.mxu0 0.0
        %1160 = vmatpush1.msra.mxu0 0.0
        %1161 = vmatprep.subr.mxu0 0.0
        %1162 = vmatpush1.msra.mxu0 0.0
        %1163 = vmatprep.subr.mxu0 0.0
        %1164 = vmatpush1.msra.mxu0 0.0
        %1165 = vmatprep.subr.mxu0 0.0
        %1166 = vmatpush1.msra.mxu0 0.0
        %1167 = vmatprep.subr.mxu0 0.0
        %1168 = vmatpush1.msra.mxu0 0.0
        %1169 = vmatprep.subr.mxu0 0.0
        %1170 = vmatpush1.msra.mxu0 0.0
        %1171 = vmatprep.subr.mxu0 0.0
        %1172 = vmatpush1.msra.mxu0 0.0
        %1173 = vmatprep.subr.mxu0 0.0
        %1174 = vmatpush1.msra.mxu0 0.0
        %1175 = vmatprep.subr.mxu0 0.0
        %1176 = vmatpush1.msra.mxu0 0.0
        %1177 = vmatprep.subr.mxu0 0.0
        %1178 = vmatpush1.msra.mxu0 0.0
        %1179 = vmatprep.subr.mxu0 0.0
        %1180 = vmatpush1.msra.mxu0 0.0
        %1181 = vmatprep.subr.mxu0 0.0
        %1182 = vmatpush1.msra.mxu0 0.0
        %1183 = vmatprep.subr.mxu0 0.0
        %1184 = vmatpush1.msra.mxu0 0.0
        %1185 = vmatprep.subr.mxu0 0.0
        %1186 = vmatpush1.msra.mxu0 0.0
        %1187 = vmatprep.subr.mxu0 0.0
        %1188 = vmatpush1.msra.mxu0 0.0
        %1189 = vmatprep.mubr.f32.mxu0 0.0
        %1190 = vmatmul.mubr.f32.gmra.mrb[0].mxu0 %v1093
        %v1191 = vpop.f32.mrb[0].mxu0
        %v1192 = vadd.f32 0.0, %v1191
        %v1193 = vpop.f32.mrb[0].mxu0
        %1194 = vmatprep.mubr.f32.mxu0 0.0
        %1195 = vmatmul.mubr.f32.gmra.mrb[0].mxu0 %v1095
        %v1196 = vpop.f32.mrb[0].mxu0
        %v1197 = vadd.f32 0.0, %v1196
        %v1198 = vpop.f32.mrb[0].mxu0
        %1199 = vmatprep.mubr.f32.mxu0 0.0
        %1200 = vmatmul.mubr.f32.gmra.mrb[0].mxu0 %v1097
        %v1201 = vpop.f32.mrb[0].mxu0
        %v1202 = vadd.f32 0.0, %v1201
        %v1203 = vpop.f32.mrb[0].mxu0
        %1204 = vmatprep.mubr.f32.mxu0 0.0
        %1205 = vmatmul.mubr.f32.gmra.mrb[0].mxu0 %v1099
        %v1206 = vpop.f32.mrb[0].mxu0
        %v1207 = vadd.f32 0.0, %v1206
        %v1208 = vpop.f32.mrb[0].mxu0
        %1209 = vmatprep.mubr.f32.mxu0 0.0
        %1210 = vmatmul.mubr.f32.gmra.mrb[0].mxu0 %v1101
        %v1211 = vpop.f32.mrb[0].mxu0
        %v1212 = vadd.f32 0.0, %v1211
        %v1213 = vpop.f32.mrb[0].mxu0
        %1214 = vmatprep.mubr.f32.mxu0 0.0
        %1215 = vmatmul.mubr.f32.gmra.mrb[0].mxu0 %v1103
        %v1216 = vpop.f32.mrb[0].mxu0
        %v1217 = vadd.f32 0.0, %v1216
        %v1218 = vpop.f32.mrb[0].mxu0
        %1219 = vmatprep.mubr.f32.mxu0 0.0
        %1220 = vmatmul.mubr.f32.gmra.mrb[0].mxu0 %v1105
        %v1221 = vpop.f32.mrb[0].mxu0
        %v1222 = vadd.f32 0.0, %v1221
        %v1223 = vpop.f32.mrb[0].mxu0
        %1224 = vmatprep.mubr.f32.mxu0 0.0
        %1225 = vmatmul.mubr.f32.gmra.mrb[0].mxu0 %v1107
        %v1226 = vpop.f32.mrb[0].mxu0
        %v1227 = vadd.f32 0.0, %v1226
        %v1228 = vpop.f32.mrb[0].mxu0
        %1229 = vmatprep.mubr.f32.mxu0 0.0
        %1230 = vmatmul.mubr.f32.gmra.mrb[0].mxu0 %v1109
        %v1231 = vpop.f32.mrb[0].mxu0
        %v1232 = vadd.f32 0.0, %v1231
        %v1233 = vpop.f32.mrb[0].mxu0
        %1234 = vmatprep.mubr.f32.mxu0 0.0
        %1235 = vmatmul.mubr.f32.gmra.mrb[0].mxu0 %v1111
        %v1236 = vpop.f32.mrb[0].mxu0
        %v1237 = vadd.f32 0.0, %v1236
        %v1238 = vpop.f32.mrb[0].mxu0
        %1239 = vmatprep.mubr.f32.mxu0 0.0
        %1240 = vmatmul.mubr.f32.gmra.mrb[0].mxu0 %v1113
        %v1241 = vpop.f32.mrb[0].mxu0
        %v1242 = vadd.f32 0.0, %v1241
        %v1243 = vpop.f32.mrb[0].mxu0
        %1244 = vmatprep.mubr.f32.mxu0 0.0
        %1245 = vmatmul.mubr.f32.gmra.mrb[0].mxu0 %v1115
        %v1246 = vpop.f32.mrb[0].mxu0
        %v1247 = vadd.f32 0.0, %v1246
        %v1248 = vpop.f32.mrb[0].mxu0
        %1249 = vmatprep.mubr.f32.mxu0 0.0
        %1250 = vmatmul.mubr.f32.gmra.mrb[0].mxu0 %v1117
        %v1251 = vpop.f32.mrb[0].mxu0
        %v1252 = vadd.f32 0.0, %v1251
        %v1253 = vpop.f32.mrb[0].mxu0
        %1254 = vmatprep.mubr.f32.mxu0 0.0
        %1255 = vmatmul.mubr.f32.gmra.mrb[0].mxu0 %v1119
        %v1256 = vpop.f32.mrb[0].mxu0
        %v1257 = vadd.f32 0.0, %v1256
        %v1258 = vpop.f32.mrb[0].mxu0
        %1259 = vmatprep.mubr.f32.mxu0 0.0
        %1260 = vmatmul.mubr.f32.gmra.mrb[0].mxu0 %v1121
        %v1261 = vpop.f32.mrb[0].mxu0
        %v1262 = vadd.f32 0.0, %v1261
        %v1263 = vpop.f32.mrb[0].mxu0
        %1264 = vmatprep.mubr.f32.mxu0 0.0
        %1265 = vmatmul.mubr.f32.gmra.mrb[0].mxu0 %v1123
        %v1266 = vpop.f32.mrb[0].mxu0
        %v1267 = vadd.f32 0.0, %v1266
        %v1268 = vpop.f32.mrb[0].mxu0
        %1269 = vdwg.mxu0
        %v1270 = vadd.f32 %v974, %v1192
        %v1271 = vadd.f32 %v979, %v1197
        %v1272 = vadd.f32 %v984, %v1202
        %v1273 = vadd.f32 %v989, %v1207
        %v1274 = vadd.f32 %v994, %v1212
        %v1275 = vadd.f32 %v999, %v1217
        %v1276 = vadd.f32 %v1004, %v1222
        %v1277 = vadd.f32 %v1009, %v1227
        %v1278 = vadd.f32 %v1014, %v1232
        %v1279 = vadd.f32 %v1019, %v1237
        %v1280 = vadd.f32 %v1024, %v1242
        %v1281 = vadd.f32 %v1029, %v1247
        %v1282 = vadd.f32 %v1034, %v1252
        %v1283 = vadd.f32 %v1039, %v1257
        %v1284 = vadd.f32 %v1044, %v1262
        %v1285 = vadd.f32 %v1049, %v1267
        %v1287 = vsel %vm697, %v617, 0
        %v1290 = vsel %vm697, %v618, 0
        %1292 = vmatprep.subr.mxu0 0.0
        %1293 = vmatpush1.msra.mxu0 %v626
        %1294 = vmatprep.subr.mxu0 0.0
        %1295 = vmatpush1.msra.mxu0 0.0
        %1296 = vmatprep.subr.mxu0 0.0
        %1297 = vmatpush1.msra.mxu0 0.0
        %1298 = vmatprep.subr.mxu0 0.0
        %1299 = vmatpush1.msra.mxu0 0.0
        %1300 = vmatprep.subr.mxu0 0.0
        %1301 = vmatpush1.msra.mxu0 0.0
        %1302 = vmatprep.subr.mxu0 0.0
        %1303 = vmatpush1.msra.mxu0 0.0
        %1304 = vmatprep.subr.mxu0 0.0
        %1305 = vmatpush1.msra.mxu0 0.0
        %1306 = vmatprep.subr.mxu0 0.0
        %1307 = vmatpush1.msra.mxu0 0.0
        %1308 = vmatprep.subr.mxu0 0.0
        %1309 = vmatpush1.msra.mxu0 0.0
        %1310 = vmatprep.subr.mxu0 0.0
        %1311 = vmatpush1.msra.mxu0 0.0
        %1312 = vmatprep.subr.mxu0 0.0
        %1313 = vmatpush1.msra.mxu0 0.0
        %1314 = vmatprep.subr.mxu0 0.0
        %1315 = vmatpush1.msra.mxu0 0.0
        %1316 = vmatprep.subr.mxu0 0.0
        %1317 = vmatpush1.msra.mxu0 0.0
        %1318 = vmatprep.subr.mxu0 0.0
        %1319 = vmatpush1.msra.mxu0 0.0
        %1320 = vmatprep.subr.mxu0 0.0
        %1321 = vmatpush1.msra.mxu0 0.0
        %1322 = vmatprep.subr.mxu0 0.0
        %1323 = vmatpush1.msra.mxu0 0.0
        %1324 = vmatprep.subr.mxu0 0.0
        %1325 = vmatpush1.msra.mxu0 0.0
        %1326 = vmatprep.subr.mxu0 0.0
        %1327 = vmatpush1.msra.mxu0 0.0
        %1328 = vmatprep.subr.mxu0 0.0
        %1329 = vmatpush1.msra.mxu0 0.0
        %1330 = vmatprep.subr.mxu0 0.0
        %1331 = vmatpush1.msra.mxu0 0.0
        %1332 = vmatprep.subr.mxu0 0.0
        %1333 = vmatpush1.msra.mxu0 0.0
        %1334 = vmatprep.subr.mxu0 0.0
        %1335 = vmatpush1.msra.mxu0 0.0
        %1336 = vmatprep.subr.mxu0 0.0
        %1337 = vmatpush1.msra.mxu0 0.0
        %1338 = vmatprep.subr.mxu0 0.0
        %1339 = vmatpush1.msra.mxu0 0.0
        %1340 = vmatprep.subr.mxu0 0.0
        %1341 = vmatpush1.msra.mxu0 0.0
        %1342 = vmatprep.subr.mxu0 0.0
        %1343 = vmatpush1.msra.mxu0 0.0
        %1344 = vmatprep.subr.mxu0 0.0
        %1345 = vmatpush1.msra.mxu0 0.0
        %1346 = vmatprep.subr.mxu0 0.0
        %1347 = vmatpush1.msra.mxu0 0.0
        %1348 = vmatprep.subr.mxu0 0.0
        %1349 = vmatpush1.msra.mxu0 0.0
        %1350 = vmatprep.subr.mxu0 0.0
        %1351 = vmatpush1.msra.mxu0 0.0
        %1352 = vmatprep.subr.mxu0 0.0
        %1353 = vmatpush1.msra.mxu0 0.0
        %1354 = vmatprep.subr.mxu0 0.0
        %1355 = vmatpush1.msra.mxu0 0.0
        %1356 = vmatprep.mubr.f32.mxu0 0.0
        %1357 = vmatmul.mubr.f32.gmra.mrb[0].mxu0 %v879
        %v1358 = vpop.f32.mrb[0].mxu0
        %v1359 = vadd.f32 0.0, %v1358
        %v1360 = vpop.f32.mrb[0].mxu0
        %1361 = vmatprep.mubr.f32.mxu0 0.0
        %1362 = vmatmul.mubr.f32.gmra.mrb[0].mxu0 %v881
        %v1363 = vpop.f32.mrb[0].mxu0
        %v1364 = vadd.f32 0.0, %v1363
        %v1365 = vpop.f32.mrb[0].mxu0
        %1366 = vmatprep.mubr.f32.mxu0 0.0
        %1367 = vmatmul.mubr.f32.gmra.mrb[0].mxu0 %v883
        %v1368 = vpop.f32.mrb[0].mxu0
        %v1369 = vadd.f32 0.0, %v1368
        %v1370 = vpop.f32.mrb[0].mxu0
        %1371 = vmatprep.mubr.f32.mxu0 0.0
        %1372 = vmatmul.mubr.f32.gmra.mrb[0].mxu0 %v885
        %v1373 = vpop.f32.mrb[0].mxu0
        %v1374 = vadd.f32 0.0, %v1373
        %v1375 = vpop.f32.mrb[0].mxu0
        %1376 = vmatprep.mubr.f32.mxu0 0.0
        %1377 = vmatmul.mubr.f32.gmra.mrb[0].mxu0 %v887
        %v1378 = vpop.f32.mrb[0].mxu0
        %v1379 = vadd.f32 0.0, %v1378
        %v1380 = vpop.f32.mrb[0].mxu0
        %1381 = vmatprep.mubr.f32.mxu0 0.0
        %1382 = vmatmul.mubr.f32.gmra.mrb[0].mxu0 %v889
        %v1383 = vpop.f32.mrb[0].mxu0
        %v1384 = vadd.f32 0.0, %v1383
        %v1385 = vpop.f32.mrb[0].mxu0
        %1386 = vmatprep.mubr.f32.mxu0 0.0
        %1387 = vmatmul.mubr.f32.gmra.mrb[0].mxu0 %v891
        %v1388 = vpop.f32.mrb[0].mxu0
        %v1389 = vadd.f32 0.0, %v1388
        %v1390 = vpop.f32.mrb[0].mxu0
        %1391 = vmatprep.mubr.f32.mxu0 0.0
        %1392 = vmatmul.mubr.f32.gmra.mrb[0].mxu0 %v893
        %v1393 = vpop.f32.mrb[0].mxu0
        %v1394 = vadd.f32 0.0, %v1393
        %v1395 = vpop.f32.mrb[0].mxu0
        %1396 = vmatprep.mubr.f32.mxu0 0.0
        %1397 = vmatmul.mubr.f32.gmra.mrb[0].mxu0 %v895
        %v1398 = vpop.f32.mrb[0].mxu0
        %v1399 = vadd.f32 0.0, %v1398
        %v1400 = vpop.f32.mrb[0].mxu0
        %1401 = vmatprep.mubr.f32.mxu0 0.0
        %1402 = vmatmul.mubr.f32.gmra.mrb[0].mxu0 %v897
        %v1403 = vpop.f32.mrb[0].mxu0
        %v1404 = vadd.f32 0.0, %v1403
        %v1405 = vpop.f32.mrb[0].mxu0
        %1406 = vmatprep.mubr.f32.mxu0 0.0
        %1407 = vmatmul.mubr.f32.gmra.mrb[0].mxu0 %v899
        %v1408 = vpop.f32.mrb[0].mxu0
        %v1409 = vadd.f32 0.0, %v1408
        %v1410 = vpop.f32.mrb[0].mxu0
        %1411 = vmatprep.mubr.f32.mxu0 0.0
        %1412 = vmatmul.mubr.f32.gmra.mrb[0].mxu0 %v901
        %v1413 = vpop.f32.mrb[0].mxu0
        %v1414 = vadd.f32 0.0, %v1413
        %v1415 = vpop.f32.mrb[0].mxu0
        %1416 = vmatprep.mubr.f32.mxu0 0.0
        %1417 = vmatmul.mubr.f32.gmra.mrb[0].mxu0 %v903
        %v1418 = vpop.f32.mrb[0].mxu0
        %v1419 = vadd.f32 0.0, %v1418
        %v1420 = vpop.f32.mrb[0].mxu0
        %1421 = vmatprep.mubr.f32.mxu0 0.0
        %1422 = vmatmul.mubr.f32.gmra.mrb[0].mxu0 %v905
        %v1423 = vpop.f32.mrb[0].mxu0
        %v1424 = vadd.f32 0.0, %v1423
        %v1425 = vpop.f32.mrb[0].mxu0
        %1426 = vmatprep.mubr.f32.mxu0 0.0
        %1427 = vmatmul.mubr.f32.gmra.mrb[0].mxu0 %v1287
        %v1428 = vpop.f32.mrb[0].mxu0
        %v1429 = vadd.f32 0.0, %v1428
        %v1430 = vpop.f32.mrb[0].mxu0
        %1431 = vmatprep.mubr.f32.mxu0 0.0
        %1432 = vmatmul.mubr.f32.gmra.mrb[0].mxu0 %v1290
        %v1433 = vpop.f32.mrb[0].mxu0
        %v1434 = vadd.f32 0.0, %v1433
        %v1435 = vpop.f32.mrb[0].mxu0
        %1436 = vdwg.mxu0
        %v1437 = vadd.f32 %v1270, %v1359
        %v1438 = vadd.f32 %v1271, %v1364
        %v1439 = vadd.f32 %v1272, %v1369
        %v1440 = vadd.f32 %v1273, %v1374
        %v1441 = vadd.f32 %v1274, %v1379
        %v1442 = vadd.f32 %v1275, %v1384
        %v1443 = vadd.f32 %v1276, %v1389
        %v1444 = vadd.f32 %v1277, %v1394
        %v1445 = vadd.f32 %v1278, %v1399
        %v1446 = vadd.f32 %v1279, %v1404
        %v1447 = vadd.f32 %v1280, %v1409
        %v1448 = vadd.f32 %v1281, %v1414
        %v1449 = vadd.f32 %v1282, %v1419
        %v1450 = vadd.f32 %v1283, %v1424
        %v1451 = vadd.f32 %v1284, %v1429
        %v1452 = vadd.f32 %v1285, %v1434
        %v1454 = vrot.slane %v617, 1
        %v1455 = vrot.slane %v618, 1
        %v1456 = vsel %vm656, %v1454, %v1455
        %v1457 = vrot.slane %v619, 1
        %v1458 = vsel %vm656, %v1455, %v1457
        %v1459 = vsel %vm697, %v1456, 0
        %v1461 = vsel %vm697, %v1458, 0
        %1463 = vmatprep.subr.mxu0 0.0
        %1464 = vmatpush1.msra.mxu0 %v627
        %1465 = vmatprep.subr.mxu0 0.0
        %1466 = vmatpush1.msra.mxu0 0.0
        %1467 = vmatprep.subr.mxu0 0.0
        %1468 = vmatpush1.msra.mxu0 0.0
        %1469 = vmatprep.subr.mxu0 0.0
        %1470 = vmatpush1.msra.mxu0 0.0
        %1471 = vmatprep.subr.mxu0 0.0
        %1472 = vmatpush1.msra.mxu0 0.0
        %1473 = vmatprep.subr.mxu0 0.0
        %1474 = vmatpush1.msra.mxu0 0.0
        %1475 = vmatprep.subr.mxu0 0.0
        %1476 = vmatpush1.msra.mxu0 0.0
        %1477 = vmatprep.subr.mxu0 0.0
        %1478 = vmatpush1.msra.mxu0 0.0
        %1479 = vmatprep.subr.mxu0 0.0
        %1480 = vmatpush1.msra.mxu0 0.0
        %1481 = vmatprep.subr.mxu0 0.0
        %1482 = vmatpush1.msra.mxu0 0.0
        %1483 = vmatprep.subr.mxu0 0.0
        %1484 = vmatpush1.msra.mxu0 0.0
        %1485 = vmatprep.subr.mxu0 0.0
        %1486 = vmatpush1.msra.mxu0 0.0
        %1487 = vmatprep.subr.mxu0 0.0
        %1488 = vmatpush1.msra.mxu0 0.0
        %1489 = vmatprep.subr.mxu0 0.0
        %1490 = vmatpush1.msra.mxu0 0.0
        %1491 = vmatprep.subr.mxu0 0.0
        %1492 = vmatpush1.msra.mxu0 0.0
        %1493 = vmatprep.subr.mxu0 0.0
        %1494 = vmatpush1.msra.mxu0 0.0
        %1495 = vmatprep.subr.mxu0 0.0
        %1496 = vmatpush1.msra.mxu0 0.0
        %1497 = vmatprep.subr.mxu0 0.0
        %1498 = vmatpush1.msra.mxu0 0.0
        %1499 = vmatprep.subr.mxu0 0.0
        %1500 = vmatpush1.msra.mxu0 0.0
        %1501 = vmatprep.subr.mxu0 0.0
        %1502 = vmatpush1.msra.mxu0 0.0
        %1503 = vmatprep.subr.mxu0 0.0
        %1504 = vmatpush1.msra.mxu0 0.0
        %1505 = vmatprep.subr.mxu0 0.0
        %1506 = vmatpush1.msra.mxu0 0.0
        %1507 = vmatprep.subr.mxu0 0.0
        %1508 = vmatpush1.msra.mxu0 0.0
        %1509 = vmatprep.subr.mxu0 0.0
        %1510 = vmatpush1.msra.mxu0 0.0
        %1511 = vmatprep.subr.mxu0 0.0
        %1512 = vmatpush1.msra.mxu0 0.0
        %1513 = vmatprep.subr.mxu0 0.0
        %1514 = vmatpush1.msra.mxu0 0.0
        %1515 = vmatprep.subr.mxu0 0.0
        %1516 = vmatpush1.msra.mxu0 0.0
        %1517 = vmatprep.subr.mxu0 0.0
        %1518 = vmatpush1.msra.mxu0 0.0
        %1519 = vmatprep.subr.mxu0 0.0
        %1520 = vmatpush1.msra.mxu0 0.0
        %1521 = vmatprep.subr.mxu0 0.0
        %1522 = vmatpush1.msra.mxu0 0.0
        %1523 = vmatprep.subr.mxu0 0.0
        %1524 = vmatpush1.msra.mxu0 0.0
        %1525 = vmatprep.subr.mxu0 0.0
        %1526 = vmatpush1.msra.mxu0 0.0
        %1527 = vmatprep.mubr.f32.mxu0 0.0
        %1528 = vmatmul.mubr.f32.gmra.mrb[0].mxu0 %v702
        %v1529 = vpop.f32.mrb[0].mxu0
        %v1530 = vadd.f32 0.0, %v1529
        %v1531 = vpop.f32.mrb[0].mxu0
        %1532 = vmatprep.mubr.f32.mxu0 0.0
        %1533 = vmatmul.mubr.f32.gmra.mrb[0].mxu0 %v704
        %v1534 = vpop.f32.mrb[0].mxu0
        %v1535 = vadd.f32 0.0, %v1534
        %v1536 = vpop.f32.mrb[0].mxu0
        %1537 = vmatprep.mubr.f32.mxu0 0.0
        %1538 = vmatmul.mubr.f32.gmra.mrb[0].mxu0 %v706
        %v1539 = vpop.f32.mrb[0].mxu0
        %v1540 = vadd.f32 0.0, %v1539
        %v1541 = vpop.f32.mrb[0].mxu0
        %1542 = vmatprep.mubr.f32.mxu0 0.0
        %1543 = vmatmul.mubr.f32.gmra.mrb[0].mxu0 %v708
        %v1544 = vpop.f32.mrb[0].mxu0
        %v1545 = vadd.f32 0.0, %v1544
        %v1546 = vpop.f32.mrb[0].mxu0
        %1547 = vmatprep.mubr.f32.mxu0 0.0
        %1548 = vmatmul.mubr.f32.gmra.mrb[0].mxu0 %v710
        %v1549 = vpop.f32.mrb[0].mxu0
        %v1550 = vadd.f32 0.0, %v1549
        %v1551 = vpop.f32.mrb[0].mxu0
        %1552 = vmatprep.mubr.f32.mxu0 0.0
        %1553 = vmatmul.mubr.f32.gmra.mrb[0].mxu0 %v712
        %v1554 = vpop.f32.mrb[0].mxu0
        %v1555 = vadd.f32 0.0, %v1554
        %v1556 = vpop.f32.mrb[0].mxu0
        %1557 = vmatprep.mubr.f32.mxu0 0.0
        %1558 = vmatmul.mubr.f32.gmra.mrb[0].mxu0 %v714
        %v1559 = vpop.f32.mrb[0].mxu0
        %v1560 = vadd.f32 0.0, %v1559
        %v1561 = vpop.f32.mrb[0].mxu0
        %1562 = vmatprep.mubr.f32.mxu0 0.0
        %1563 = vmatmul.mubr.f32.gmra.mrb[0].mxu0 %v716
        %v1564 = vpop.f32.mrb[0].mxu0
        %v1565 = vadd.f32 0.0, %v1564
        %v1566 = vpop.f32.mrb[0].mxu0
        %1567 = vmatprep.mubr.f32.mxu0 0.0
        %1568 = vmatmul.mubr.f32.gmra.mrb[0].mxu0 %v718
        %v1569 = vpop.f32.mrb[0].mxu0
        %v1570 = vadd.f32 0.0, %v1569
        %v1571 = vpop.f32.mrb[0].mxu0
        %1572 = vmatprep.mubr.f32.mxu0 0.0
        %1573 = vmatmul.mubr.f32.gmra.mrb[0].mxu0 %v720
        %v1574 = vpop.f32.mrb[0].mxu0
        %v1575 = vadd.f32 0.0, %v1574
        %v1576 = vpop.f32.mrb[0].mxu0
        %1577 = vmatprep.mubr.f32.mxu0 0.0
        %1578 = vmatmul.mubr.f32.gmra.mrb[0].mxu0 %v722
        %v1579 = vpop.f32.mrb[0].mxu0
        %v1580 = vadd.f32 0.0, %v1579
        %v1581 = vpop.f32.mrb[0].mxu0
        %1582 = vmatprep.mubr.f32.mxu0 0.0
        %1583 = vmatmul.mubr.f32.gmra.mrb[0].mxu0 %v724
        %v1584 = vpop.f32.mrb[0].mxu0
        %v1585 = vadd.f32 0.0, %v1584
        %v1586 = vpop.f32.mrb[0].mxu0
        %1587 = vmatprep.mubr.f32.mxu0 0.0
        %1588 = vmatmul.mubr.f32.gmra.mrb[0].mxu0 %v726
        %v1589 = vpop.f32.mrb[0].mxu0
        %v1590 = vadd.f32 0.0, %v1589
        %v1591 = vpop.f32.mrb[0].mxu0
        %1592 = vmatprep.mubr.f32.mxu0 0.0
        %1593 = vmatmul.mubr.f32.gmra.mrb[0].mxu0 %v728
        %v1594 = vpop.f32.mrb[0].mxu0
        %v1595 = vadd.f32 0.0, %v1594
        %v1596 = vpop.f32.mrb[0].mxu0
        %1597 = vmatprep.mubr.f32.mxu0 0.0
        %1598 = vmatmul.mubr.f32.gmra.mrb[0].mxu0 %v1459
        %v1599 = vpop.f32.mrb[0].mxu0
        %v1600 = vadd.f32 0.0, %v1599
        %v1601 = vpop.f32.mrb[0].mxu0
        %1602 = vmatprep.mubr.f32.mxu0 0.0
        %1603 = vmatmul.mubr.f32.gmra.mrb[0].mxu0 %v1461
        %v1604 = vpop.f32.mrb[0].mxu0
        %v1605 = vadd.f32 0.0, %v1604
        %v1606 = vpop.f32.mrb[0].mxu0
        %1607 = vdwg.mxu0
        %v1608 = vadd.f32 %v1437, %v1530
        %v1609 = vadd.f32 %v1438, %v1535
        %v1610 = vadd.f32 %v1439, %v1540
        %v1611 = vadd.f32 %v1440, %v1545
        %v1612 = vadd.f32 %v1441, %v1550
        %v1613 = vadd.f32 %v1442, %v1555
        %v1614 = vadd.f32 %v1443, %v1560
        %v1615 = vadd.f32 %v1444, %v1565
        %v1616 = vadd.f32 %v1445, %v1570
        %v1617 = vadd.f32 %v1446, %v1575
        %v1618 = vadd.f32 %v1447, %v1580
        %v1619 = vadd.f32 %v1448, %v1585
        %v1620 = vadd.f32 %v1449, %v1590
        %v1621 = vadd.f32 %v1450, %v1595
        %v1622 = vadd.f32 %v1451, %v1600
        %v1623 = vadd.f32 %v1452, %v1605
        %v1624 = vrot.slane %v617, 2
        %v1625 = vrot.slane %v618, 2
        %v1626 = vsel %vm1052, %v1624, %v1625
        %v1627 = vrot.slane %v619, 2
        %v1628 = vsel %vm1052, %v1625, %v1627
        %v1629 = vsel %vm697, %v1626, 0
        %v1631 = vsel %vm697, %v1628, 0
        %1633 = vmatprep.subr.mxu0 0.0
        %1634 = vmatpush1.msra.mxu0 %v628
        %1635 = vmatprep.subr.mxu0 0.0
        %1636 = vmatpush1.msra.mxu0 0.0
        %1637 = vmatprep.subr.mxu0 0.0
        %1638 = vmatpush1.msra.mxu0 0.0
        %1639 = vmatprep.subr.mxu0 0.0
        %1640 = vmatpush1.msra.mxu0 0.0
        %1641 = vmatprep.subr.mxu0 0.0
        %1642 = vmatpush1.msra.mxu0 0.0
        %1643 = vmatprep.subr.mxu0 0.0
        %1644 = vmatpush1.msra.mxu0 0.0
        %1645 = vmatprep.subr.mxu0 0.0
        %1646 = vmatpush1.msra.mxu0 0.0
        %1647 = vmatprep.subr.mxu0 0.0
        %1648 = vmatpush1.msra.mxu0 0.0
        %1649 = vmatprep.subr.mxu0 0.0
        %1650 = vmatpush1.msra.mxu0 0.0
        %1651 = vmatprep.subr.mxu0 0.0
        %1652 = vmatpush1.msra.mxu0 0.0
        %1653 = vmatprep.subr.mxu0 0.0
        %1654 = vmatpush1.msra.mxu0 0.0
        %1655 = vmatprep.subr.mxu0 0.0
        %1656 = vmatpush1.msra.mxu0 0.0
        %1657 = vmatprep.subr.mxu0 0.0
        %1658 = vmatpush1.msra.mxu0 0.0
        %1659 = vmatprep.subr.mxu0 0.0
        %1660 = vmatpush1.msra.mxu0 0.0
        %1661 = vmatprep.subr.mxu0 0.0
        %1662 = vmatpush1.msra.mxu0 0.0
        %1663 = vmatprep.subr.mxu0 0.0
        %1664 = vmatpush1.msra.mxu0 0.0
        %1665 = vmatprep.subr.mxu0 0.0
        %1666 = vmatpush1.msra.mxu0 0.0
        %1667 = vmatprep.subr.mxu0 0.0
        %1668 = vmatpush1.msra.mxu0 0.0
        %1669 = vmatprep.subr.mxu0 0.0
        %1670 = vmatpush1.msra.mxu0 0.0
        %1671 = vmatprep.subr.mxu0 0.0
        %1672 = vmatpush1.msra.mxu0 0.0
        %1673 = vmatprep.subr.mxu0 0.0
        %1674 = vmatpush1.msra.mxu0 0.0
        %1675 = vmatprep.subr.mxu0 0.0
        %1676 = vmatpush1.msra.mxu0 0.0
        %1677 = vmatprep.subr.mxu0 0.0
        %1678 = vmatpush1.msra.mxu0 0.0
        %1679 = vmatprep.subr.mxu0 0.0
        %1680 = vmatpush1.msra.mxu0 0.0
        %1681 = vmatprep.subr.mxu0 0.0
        %1682 = vmatpush1.msra.mxu0 0.0
        %1683 = vmatprep.subr.mxu0 0.0
        %1684 = vmatpush1.msra.mxu0 0.0
        %1685 = vmatprep.subr.mxu0 0.0
        %1686 = vmatpush1.msra.mxu0 0.0
        %1687 = vmatprep.subr.mxu0 0.0
        %1688 = vmatpush1.msra.mxu0 0.0
        %1689 = vmatprep.subr.mxu0 0.0
        %1690 = vmatpush1.msra.mxu0 0.0
        %1691 = vmatprep.subr.mxu0 0.0
        %1692 = vmatpush1.msra.mxu0 0.0
        %1693 = vmatprep.subr.mxu0 0.0
        %1694 = vmatpush1.msra.mxu0 0.0
        %1695 = vmatprep.subr.mxu0 0.0
        %1696 = vmatpush1.msra.mxu0 0.0
        %1697 = vmatprep.mubr.f32.mxu0 0.0
        %1698 = vmatmul.mubr.f32.gmra.mrb[0].mxu0 %v1097
        %v1699 = vpop.f32.mrb[0].mxu0
        %v1700 = vadd.f32 0.0, %v1699
        %v1701 = vpop.f32.mrb[0].mxu0
        %1702 = vmatprep.mubr.f32.mxu0 0.0
        %1703 = vmatmul.mubr.f32.gmra.mrb[0].mxu0 %v1099
        %v1704 = vpop.f32.mrb[0].mxu0
        %v1705 = vadd.f32 0.0, %v1704
        %v1706 = vpop.f32.mrb[0].mxu0
        %1707 = vmatprep.mubr.f32.mxu0 0.0
        %1708 = vmatmul.mubr.f32.gmra.mrb[0].mxu0 %v1101
        %v1709 = vpop.f32.mrb[0].mxu0
        %v1710 = vadd.f32 0.0, %v1709
        %v1711 = vpop.f32.mrb[0].mxu0
        %1712 = vmatprep.mubr.f32.mxu0 0.0
        %1713 = vmatmul.mubr.f32.gmra.mrb[0].mxu0 %v1103
        %v1714 = vpop.f32.mrb[0].mxu0
        %v1715 = vadd.f32 0.0, %v1714
        %v1716 = vpop.f32.mrb[0].mxu0
        %1717 = vmatprep.mubr.f32.mxu0 0.0
        %1718 = vmatmul.mubr.f32.gmra.mrb[0].mxu0 %v1105
        %v1719 = vpop.f32.mrb[0].mxu0
        %v1720 = vadd.f32 0.0, %v1719
        %v1721 = vpop.f32.mrb[0].mxu0
        %1722 = vmatprep.mubr.f32.mxu0 0.0
        %1723 = vmatmul.mubr.f32.gmra.mrb[0].mxu0 %v1107
        %v1724 = vpop.f32.mrb[0].mxu0
        %v1725 = vadd.f32 0.0, %v1724
        %v1726 = vpop.f32.mrb[0].mxu0
        %1727 = vmatprep.mubr.f32.mxu0 0.0
        %1728 = vmatmul.mubr.f32.gmra.mrb[0].mxu0 %v1109
        %v1729 = vpop.f32.mrb[0].mxu0
        %v1730 = vadd.f32 0.0, %v1729
        %v1731 = vpop.f32.mrb[0].mxu0
        %1732 = vmatprep.mubr.f32.mxu0 0.0
        %1733 = vmatmul.mubr.f32.gmra.mrb[0].mxu0 %v1111
        %v1734 = vpop.f32.mrb[0].mxu0
        %v1735 = vadd.f32 0.0, %v1734
        %v1736 = vpop.f32.mrb[0].mxu0
        %1737 = vmatprep.mubr.f32.mxu0 0.0
        %1738 = vmatmul.mubr.f32.gmra.mrb[0].mxu0 %v1113
        %v1739 = vpop.f32.mrb[0].mxu0
        %v1740 = vadd.f32 0.0, %v1739
        %v1741 = vpop.f32.mrb[0].mxu0
        %1742 = vmatprep.mubr.f32.mxu0 0.0
        %1743 = vmatmul.mubr.f32.gmra.mrb[0].mxu0 %v1115
        %v1744 = vpop.f32.mrb[0].mxu0
        %v1745 = vadd.f32 0.0, %v1744
        %v1746 = vpop.f32.mrb[0].mxu0
        %1747 = vmatprep.mubr.f32.mxu0 0.0
        %1748 = vmatmul.mubr.f32.gmra.mrb[0].mxu0 %v1117
        %v1749 = vpop.f32.mrb[0].mxu0
        %v1750 = vadd.f32 0.0, %v1749
        %v1751 = vpop.f32.mrb[0].mxu0
        %1752 = vmatprep.mubr.f32.mxu0 0.0
        %1753 = vmatmul.mubr.f32.gmra.mrb[0].mxu0 %v1119
        %v1754 = vpop.f32.mrb[0].mxu0
        %v1755 = vadd.f32 0.0, %v1754
        %v1756 = vpop.f32.mrb[0].mxu0
        %1757 = vmatprep.mubr.f32.mxu0 0.0
        %1758 = vmatmul.mubr.f32.gmra.mrb[0].mxu0 %v1121
        %v1759 = vpop.f32.mrb[0].mxu0
        %v1760 = vadd.f32 0.0, %v1759
        %v1761 = vpop.f32.mrb[0].mxu0
        %1762 = vmatprep.mubr.f32.mxu0 0.0
        %1763 = vmatmul.mubr.f32.gmra.mrb[0].mxu0 %v1123
        %v1764 = vpop.f32.mrb[0].mxu0
        %v1765 = vadd.f32 0.0, %v1764
        %v1766 = vpop.f32.mrb[0].mxu0
        %1767 = vmatprep.mubr.f32.mxu0 0.0
        %1768 = vmatmul.mubr.f32.gmra.mrb[0].mxu0 %v1629
        %v1769 = vpop.f32.mrb[0].mxu0
        %v1770 = vadd.f32 0.0, %v1769
        %v1771 = vpop.f32.mrb[0].mxu0
        %1772 = vmatprep.mubr.f32.mxu0 0.0
        %1773 = vmatmul.mubr.f32.gmra.mrb[0].mxu0 %v1631
        %v1774 = vpop.f32.mrb[0].mxu0
        %v1775 = vadd.f32 0.0, %v1774
        %v1776 = vpop.f32.mrb[0].mxu0
        %1777 = vdwg.mxu0
        %v1778 = vadd.f32 %v1608, %v1700
        %v1779 = vadd.f32 %v1609, %v1705
        %v1780 = vadd.f32 %v1610, %v1710
        %v1781 = vadd.f32 %v1611, %v1715
        %v1782 = vadd.f32 %v1612, %v1720
        %v1783 = vadd.f32 %v1613, %v1725
        %v1784 = vadd.f32 %v1614, %v1730
        %v1785 = vadd.f32 %v1615, %v1735
        %v1786 = vadd.f32 %v1616, %v1740
        %v1787 = vadd.f32 %v1617, %v1745
        %v1788 = vadd.f32 %v1618, %v1750
        %v1789 = vadd.f32 %v1619, %v1755
        %v1790 = vadd.f32 %v1620, %v1760
        %v1791 = vadd.f32 %v1621, %v1765
        %v1792 = vadd.f32 %v1622, %v1770
        %v1793 = vadd.f32 %v1623, %v1775
        %v1795 = vsel %vm697, %v620, 0
        %v1798 = vsel %vm697, %v621, 0
        %1800 = vmatprep.subr.mxu0 0.0
        %1801 = vmatpush1.msra.mxu0 %v629
        %1802 = vmatprep.subr.mxu0 0.0
        %1803 = vmatpush1.msra.mxu0 0.0
        %1804 = vmatprep.subr.mxu0 0.0
        %1805 = vmatpush1.msra.mxu0 0.0
        %1806 = vmatprep.subr.mxu0 0.0
        %1807 = vmatpush1.msra.mxu0 0.0
        %1808 = vmatprep.subr.mxu0 0.0
        %1809 = vmatpush1.msra.mxu0 0.0
        %1810 = vmatprep.subr.mxu0 0.0
        %1811 = vmatpush1.msra.mxu0 0.0
        %1812 = vmatprep.subr.mxu0 0.0
        %1813 = vmatpush1.msra.mxu0 0.0
        %1814 = vmatprep.subr.mxu0 0.0
        %1815 = vmatpush1.msra.mxu0 0.0
        %1816 = vmatprep.subr.mxu0 0.0
        %1817 = vmatpush1.msra.mxu0 0.0
        %1818 = vmatprep.subr.mxu0 0.0
        %1819 = vmatpush1.msra.mxu0 0.0
        %1820 = vmatprep.subr.mxu0 0.0
        %1821 = vmatpush1.msra.mxu0 0.0
        %1822 = vmatprep.subr.mxu0 0.0
        %1823 = vmatpush1.msra.mxu0 0.0
        %1824 = vmatprep.subr.mxu0 0.0
        %1825 = vmatpush1.msra.mxu0 0.0
        %1826 = vmatprep.subr.mxu0 0.0
        %1827 = vmatpush1.msra.mxu0 0.0
        %1828 = vmatprep.subr.mxu0 0.0
        %1829 = vmatpush1.msra.mxu0 0.0
        %1830 = vmatprep.subr.mxu0 0.0
        %1831 = vmatpush1.msra.mxu0 0.0
        %1832 = vmatprep.subr.mxu0 0.0
        %1833 = vmatpush1.msra.mxu0 0.0
        %1834 = vmatprep.subr.mxu0 0.0
        %1835 = vmatpush1.msra.mxu0 0.0
        %1836 = vmatprep.subr.mxu0 0.0
        %1837 = vmatpush1.msra.mxu0 0.0
        %1838 = vmatprep.subr.mxu0 0.0
        %1839 = vmatpush1.msra.mxu0 0.0
        %1840 = vmatprep.subr.mxu0 0.0
        %1841 = vmatpush1.msra.mxu0 0.0
        %1842 = vmatprep.subr.mxu0 0.0
        %1843 = vmatpush1.msra.mxu0 0.0
        %1844 = vmatprep.subr.mxu0 0.0
        %1845 = vmatpush1.msra.mxu0 0.0
        %1846 = vmatprep.subr.mxu0 0.0
        %1847 = vmatpush1.msra.mxu0 0.0
        %1848 = vmatprep.subr.mxu0 0.0
        %1849 = vmatpush1.msra.mxu0 0.0
        %1850 = vmatprep.subr.mxu0 0.0
        %1851 = vmatpush1.msra.mxu0 0.0
        %1852 = vmatprep.subr.mxu0 0.0
        %1853 = vmatpush1.msra.mxu0 0.0
        %1854 = vmatprep.subr.mxu0 0.0
        %1855 = vmatpush1.msra.mxu0 0.0
        %1856 = vmatprep.subr.mxu0 0.0
        %1857 = vmatpush1.msra.mxu0 0.0
        %1858 = vmatprep.subr.mxu0 0.0
        %1859 = vmatpush1.msra.mxu0 0.0
        %1860 = vmatprep.subr.mxu0 0.0
        %1861 = vmatpush1.msra.mxu0 0.0
        %1862 = vmatprep.subr.mxu0 0.0
        %1863 = vmatpush1.msra.mxu0 0.0
        %1864 = vmatprep.mubr.f32.mxu0 0.0
        %1865 = vmatmul.mubr.f32.gmra.mrb[0].mxu0 %v883
        %v1866 = vpop.f32.mrb[0].mxu0
        %v1867 = vadd.f32 0.0, %v1866
        %v1868 = vpop.f32.mrb[0].mxu0
        %1869 = vmatprep.mubr.f32.mxu0 0.0
        %1870 = vmatmul.mubr.f32.gmra.mrb[0].mxu0 %v885
        %v1871 = vpop.f32.mrb[0].mxu0
        %v1872 = vadd.f32 0.0, %v1871
        %v1873 = vpop.f32.mrb[0].mxu0
        %1874 = vmatprep.mubr.f32.mxu0 0.0
        %1875 = vmatmul.mubr.f32.gmra.mrb[0].mxu0 %v887
        %v1876 = vpop.f32.mrb[0].mxu0
        %v1877 = vadd.f32 0.0, %v1876
        %v1878 = vpop.f32.mrb[0].mxu0
        %1879 = vmatprep.mubr.f32.mxu0 0.0
        %1880 = vmatmul.mubr.f32.gmra.mrb[0].mxu0 %v889
        %v1881 = vpop.f32.mrb[0].mxu0
        %v1882 = vadd.f32 0.0, %v1881
        %v1883 = vpop.f32.mrb[0].mxu0
        %1884 = vmatprep.mubr.f32.mxu0 0.0
        %1885 = vmatmul.mubr.f32.gmra.mrb[0].mxu0 %v891
        %v1886 = vpop.f32.mrb[0].mxu0
        %v1887 = vadd.f32 0.0, %v1886
        %v1888 = vpop.f32.mrb[0].mxu0
        %1889 = vmatprep.mubr.f32.mxu0 0.0
        %1890 = vmatmul.mubr.f32.gmra.mrb[0].mxu0 %v893
        %v1891 = vpop.f32.mrb[0].mxu0
        %v1892 = vadd.f32 0.0, %v1891
        %v1893 = vpop.f32.mrb[0].mxu0
        %1894 = vmatprep.mubr.f32.mxu0 0.0
        %1895 = vmatmul.mubr.f32.gmra.mrb[0].mxu0 %v895
        %v1896 = vpop.f32.mrb[0].mxu0
        %v1897 = vadd.f32 0.0, %v1896
        %v1898 = vpop.f32.mrb[0].mxu0
        %1899 = vmatprep.mubr.f32.mxu0 0.0
        %1900 = vmatmul.mubr.f32.gmra.mrb[0].mxu0 %v897
        %v1901 = vpop.f32.mrb[0].mxu0
        %v1902 = vadd.f32 0.0, %v1901
        %v1903 = vpop.f32.mrb[0].mxu0
        %1904 = vmatprep.mubr.f32.mxu0 0.0
        %1905 = vmatmul.mubr.f32.gmra.mrb[0].mxu0 %v899
        %v1906 = vpop.f32.mrb[0].mxu0
        %v1907 = vadd.f32 0.0, %v1906
        %v1908 = vpop.f32.mrb[0].mxu0
        %1909 = vmatprep.mubr.f32.mxu0 0.0
        %1910 = vmatmul.mubr.f32.gmra.mrb[0].mxu0 %v901
        %v1911 = vpop.f32.mrb[0].mxu0
        %v1912 = vadd.f32 0.0, %v1911
        %v1913 = vpop.f32.mrb[0].mxu0
        %1914 = vmatprep.mubr.f32.mxu0 0.0
        %1915 = vmatmul.mubr.f32.gmra.mrb[0].mxu0 %v903
        %v1916 = vpop.f32.mrb[0].mxu0
        %v1917 = vadd.f32 0.0, %v1916
        %v1918 = vpop.f32.mrb[0].mxu0
        %1919 = vmatprep.mubr.f32.mxu0 0.0
        %1920 = vmatmul.mubr.f32.gmra.mrb[0].mxu0 %v905
        %v1921 = vpop.f32.mrb[0].mxu0
        %v1922 = vadd.f32 0.0, %v1921
        %v1923 = vpop.f32.mrb[0].mxu0
        %1924 = vmatprep.mubr.f32.mxu0 0.0
        %1925 = vmatmul.mubr.f32.gmra.mrb[0].mxu0 %v1287
        %v1926 = vpop.f32.mrb[0].mxu0
        %v1927 = vadd.f32 0.0, %v1926
        %v1928 = vpop.f32.mrb[0].mxu0
        %1929 = vmatprep.mubr.f32.mxu0 0.0
        %1930 = vmatmul.mubr.f32.gmra.mrb[0].mxu0 %v1290
        %v1931 = vpop.f32.mrb[0].mxu0
        %v1932 = vadd.f32 0.0, %v1931
        %v1933 = vpop.f32.mrb[0].mxu0
        %1934 = vmatprep.mubr.f32.mxu0 0.0
        %1935 = vmatmul.mubr.f32.gmra.mrb[0].mxu0 %v1795
        %v1936 = vpop.f32.mrb[0].mxu0
        %v1937 = vadd.f32 0.0, %v1936
        %v1938 = vpop.f32.mrb[0].mxu0
        %1939 = vmatprep.mubr.f32.mxu0 0.0
        %1940 = vmatmul.mubr.f32.gmra.mrb[0].mxu0 %v1798
        %v1941 = vpop.f32.mrb[0].mxu0
        %v1942 = vadd.f32 0.0, %v1941
        %v1943 = vpop.f32.mrb[0].mxu0
        %1944 = vdwg.mxu0
        %v1945 = vadd.f32 %v1778, %v1867
        %v1946 = vadd.f32 %v1779, %v1872
        %v1947 = vadd.f32 %v1780, %v1877
        %v1948 = vadd.f32 %v1781, %v1882
        %v1949 = vadd.f32 %v1782, %v1887
        %v1950 = vadd.f32 %v1783, %v1892
        %v1951 = vadd.f32 %v1784, %v1897
        %v1952 = vadd.f32 %v1785, %v1902
        %v1953 = vadd.f32 %v1786, %v1907
        %v1954 = vadd.f32 %v1787, %v1912
        %v1955 = vadd.f32 %v1788, %v1917
        %v1956 = vadd.f32 %v1789, %v1922
        %v1957 = vadd.f32 %v1790, %v1927
        %v1958 = vadd.f32 %v1791, %v1932
        %v1959 = vadd.f32 %v1792, %v1937
        %v1960 = vadd.f32 %v1793, %v1942
        %v1962 = vrot.slane %v620, 1
        %v1963 = vrot.slane %v621, 1
        %v1964 = vsel %vm656, %v1962, %v1963
        %v1965 = vrot.slane %v622, 1
        %v1966 = vsel %vm656, %v1963, %v1965
        %v1967 = vsel %vm697, %v1964, 0
        %v1969 = vsel %vm697, %v1966, 0
        %1971 = vmatprep.subr.mxu0 0.0
        %1972 = vmatpush1.msra.mxu0 %v630
        %1973 = vmatprep.subr.mxu0 0.0
        %1974 = vmatpush1.msra.mxu0 0.0
        %1975 = vmatprep.subr.mxu0 0.0
        %1976 = vmatpush1.msra.mxu0 0.0
        %1977 = vmatprep.subr.mxu0 0.0
        %1978 = vmatpush1.msra.mxu0 0.0
        %1979 = vmatprep.subr.mxu0 0.0
        %1980 = vmatpush1.msra.mxu0 0.0
        %1981 = vmatprep.subr.mxu0 0.0
        %1982 = vmatpush1.msra.mxu0 0.0
        %1983 = vmatprep.subr.mxu0 0.0
        %1984 = vmatpush1.msra.mxu0 0.0
        %1985 = vmatprep.subr.mxu0 0.0
        %1986 = vmatpush1.msra.mxu0 0.0
        %1987 = vmatprep.subr.mxu0 0.0
        %1988 = vmatpush1.msra.mxu0 0.0
        %1989 = vmatprep.subr.mxu0 0.0
        %1990 = vmatpush1.msra.mxu0 0.0
        %1991 = vmatprep.subr.mxu0 0.0
        %1992 = vmatpush1.msra.mxu0 0.0
        %1993 = vmatprep.subr.mxu0 0.0
        %1994 = vmatpush1.msra.mxu0 0.0
        %1995 = vmatprep.subr.mxu0 0.0
        %1996 = vmatpush1.msra.mxu0 0.0
        %1997 = vmatprep.subr.mxu0 0.0
        %1998 = vmatpush1.msra.mxu0 0.0
        %1999 = vmatprep.subr.mxu0 0.0
        %2000 = vmatpush1.msra.mxu0 0.0
        %2001 = vmatprep.subr.mxu0 0.0
        %2002 = vmatpush1.msra.mxu0 0.0
        %2003 = vmatprep.subr.mxu0 0.0
        %2004 = vmatpush1.msra.mxu0 0.0
        %2005 = vmatprep.subr.mxu0 0.0
        %2006 = vmatpush1.msra.mxu0 0.0
        %2007 = vmatprep.subr.mxu0 0.0
        %2008 = vmatpush1.msra.mxu0 0.0
        %2009 = vmatprep.subr.mxu0 0.0
        %2010 = vmatpush1.msra.mxu0 0.0
        %2011 = vmatprep.subr.mxu0 0.0
        %2012 = vmatpush1.msra.mxu0 0.0
        %2013 = vmatprep.subr.mxu0 0.0
        %2014 = vmatpush1.msra.mxu0 0.0
        %2015 = vmatprep.subr.mxu0 0.0
        %2016 = vmatpush1.msra.mxu0 0.0
        %2017 = vmatprep.subr.mxu0 0.0
        %2018 = vmatpush1.msra.mxu0 0.0
        %2019 = vmatprep.subr.mxu0 0.0
        %2020 = vmatpush1.msra.mxu0 0.0
        %2021 = vmatprep.subr.mxu0 0.0
        %2022 = vmatpush1.msra.mxu0 0.0
        %2023 = vmatprep.subr.mxu0 0.0
        %2024 = vmatpush1.msra.mxu0 0.0
        %2025 = vmatprep.subr.mxu0 0.0
        %2026 = vmatpush1.msra.mxu0 0.0
        %2027 = vmatprep.subr.mxu0 0.0
        %2028 = vmatpush1.msra.mxu0 0.0
        %2029 = vmatprep.subr.mxu0 0.0
        %2030 = vmatpush1.msra.mxu0 0.0
        %2031 = vmatprep.subr.mxu0 0.0
        %2032 = vmatpush1.msra.mxu0 0.0
        %2033 = vmatprep.subr.mxu0 0.0
        %2034 = vmatpush1.msra.mxu0 0.0
        %2035 = vmatprep.mubr.f32.mxu0 0.0
        %2036 = vmatmul.mubr.f32.gmra.mrb[0].mxu0 %v706
        %v2037 = vpop.f32.mrb[0].mxu0
        %v2038 = vadd.f32 0.0, %v2037
        %v2039 = vpop.f32.mrb[0].mxu0
        %2040 = vmatprep.mubr.f32.mxu0 0.0
        %2041 = vmatmul.mubr.f32.gmra.mrb[0].mxu0 %v708
        %v2042 = vpop.f32.mrb[0].mxu0
        %v2043 = vadd.f32 0.0, %v2042
        %v2044 = vpop.f32.mrb[0].mxu0
        %2045 = vmatprep.mubr.f32.mxu0 0.0
        %2046 = vmatmul.mubr.f32.gmra.mrb[0].mxu0 %v710
        %v2047 = vpop.f32.mrb[0].mxu0
        %v2048 = vadd.f32 0.0, %v2047
        %v2049 = vpop.f32.mrb[0].mxu0
        %2050 = vmatprep.mubr.f32.mxu0 0.0
        %2051 = vmatmul.mubr.f32.gmra.mrb[0].mxu0 %v712
        %v2052 = vpop.f32.mrb[0].mxu0
        %v2053 = vadd.f32 0.0, %v2052
        %v2054 = vpop.f32.mrb[0].mxu0
        %2055 = vmatprep.mubr.f32.mxu0 0.0
        %2056 = vmatmul.mubr.f32.gmra.mrb[0].mxu0 %v714
        %v2057 = vpop.f32.mrb[0].mxu0
        %v2058 = vadd.f32 0.0, %v2057
        %v2059 = vpop.f32.mrb[0].mxu0
        %2060 = vmatprep.mubr.f32.mxu0 0.0
        %2061 = vmatmul.mubr.f32.gmra.mrb[0].mxu0 %v716
        %v2062 = vpop.f32.mrb[0].mxu0
        %v2063 = vadd.f32 0.0, %v2062
        %v2064 = vpop.f32.mrb[0].mxu0
        %2065 = vmatprep.mubr.f32.mxu0 0.0
        %2066 = vmatmul.mubr.f32.gmra.mrb[0].mxu0 %v718
        %v2067 = vpop.f32.mrb[0].mxu0
        %v2068 = vadd.f32 0.0, %v2067
        %v2069 = vpop.f32.mrb[0].mxu0
        %2070 = vmatprep.mubr.f32.mxu0 0.0
        %2071 = vmatmul.mubr.f32.gmra.mrb[0].mxu0 %v720
        %v2072 = vpop.f32.mrb[0].mxu0
        %v2073 = vadd.f32 0.0, %v2072
        %v2074 = vpop.f32.mrb[0].mxu0
        %2075 = vmatprep.mubr.f32.mxu0 0.0
        %2076 = vmatmul.mubr.f32.gmra.mrb[0].mxu0 %v722
        %v2077 = vpop.f32.mrb[0].mxu0
        %v2078 = vadd.f32 0.0, %v2077
        %v2079 = vpop.f32.mrb[0].mxu0
        %2080 = vmatprep.mubr.f32.mxu0 0.0
        %2081 = vmatmul.mubr.f32.gmra.mrb[0].mxu0 %v724
        %v2082 = vpop.f32.mrb[0].mxu0
        %v2083 = vadd.f32 0.0, %v2082
        %v2084 = vpop.f32.mrb[0].mxu0
        %2085 = vmatprep.mubr.f32.mxu0 0.0
        %2086 = vmatmul.mubr.f32.gmra.mrb[0].mxu0 %v726
        %v2087 = vpop.f32.mrb[0].mxu0
        %v2088 = vadd.f32 0.0, %v2087
        %v2089 = vpop.f32.mrb[0].mxu0
        %2090 = vmatprep.mubr.f32.mxu0 0.0
        %2091 = vmatmul.mubr.f32.gmra.mrb[0].mxu0 %v728
        %v2092 = vpop.f32.mrb[0].mxu0
        %v2093 = vadd.f32 0.0, %v2092
        %v2094 = vpop.f32.mrb[0].mxu0
        %2095 = vmatprep.mubr.f32.mxu0 0.0
        %2096 = vmatmul.mubr.f32.gmra.mrb[0].mxu0 %v1459
        %v2097 = vpop.f32.mrb[0].mxu0
        %v2098 = vadd.f32 0.0, %v2097
        %v2099 = vpop.f32.mrb[0].mxu0
        %2100 = vmatprep.mubr.f32.mxu0 0.0
        %2101 = vmatmul.mubr.f32.gmra.mrb[0].mxu0 %v1461
        %v2102 = vpop.f32.mrb[0].mxu0
        %v2103 = vadd.f32 0.0, %v2102
        %v2104 = vpop.f32.mrb[0].mxu0
        %2105 = vmatprep.mubr.f32.mxu0 0.0
        %2106 = vmatmul.mubr.f32.gmra.mrb[0].mxu0 %v1967
        %v2107 = vpop.f32.mrb[0].mxu0
        %v2108 = vadd.f32 0.0, %v2107
        %v2109 = vpop.f32.mrb[0].mxu0
        %2110 = vmatprep.mubr.f32.mxu0 0.0
        %2111 = vmatmul.mubr.f32.gmra.mrb[0].mxu0 %v1969
        %v2112 = vpop.f32.mrb[0].mxu0
        %v2113 = vadd.f32 0.0, %v2112
        %v2114 = vpop.f32.mrb[0].mxu0
        %2115 = vdwg.mxu0
        %v2116 = vadd.f32 %v1945, %v2038
        %v2117 = vadd.f32 %v1946, %v2043
        %v2118 = vadd.f32 %v1947, %v2048
        %v2119 = vadd.f32 %v1948, %v2053
        %v2120 = vadd.f32 %v1949, %v2058
        %v2121 = vadd.f32 %v1950, %v2063
        %v2122 = vadd.f32 %v1951, %v2068
        %v2123 = vadd.f32 %v1952, %v2073
        %v2124 = vadd.f32 %v1953, %v2078
        %v2125 = vadd.f32 %v1954, %v2083
        %v2126 = vadd.f32 %v1955, %v2088
        %v2127 = vadd.f32 %v1956, %v2093
        %v2128 = vadd.f32 %v1957, %v2098
        %v2129 = vadd.f32 %v1958, %v2103
        %v2130 = vadd.f32 %v1959, %v2108
        %v2131 = vadd.f32 %v1960, %v2113
        %v2132 = vrot.slane %v620, 2
        %v2133 = vrot.slane %v621, 2
        %v2134 = vsel %vm1052, %v2132, %v2133
        %v2135 = vrot.slane %v622, 2
        %v2136 = vsel %vm1052, %v2133, %v2135
        %v2137 = vsel %vm697, %v2134, 0
        %v2139 = vsel %vm697, %v2136, 0
        %2141 = vmatprep.subr.mxu0 0.0
        %2142 = vmatpush1.msra.mxu0 %v631
        %2143 = vmatprep.subr.mxu0 0.0
        %2144 = vmatpush1.msra.mxu0 0.0
        %2145 = vmatprep.subr.mxu0 0.0
        %2146 = vmatpush1.msra.mxu0 0.0
        %2147 = vmatprep.subr.mxu0 0.0
        %2148 = vmatpush1.msra.mxu0 0.0
        %2149 = vmatprep.subr.mxu0 0.0
        %2150 = vmatpush1.msra.mxu0 0.0
        %2151 = vmatprep.subr.mxu0 0.0
        %2152 = vmatpush1.msra.mxu0 0.0
        %2153 = vmatprep.subr.mxu0 0.0
        %2154 = vmatpush1.msra.mxu0 0.0
        %2155 = vmatprep.subr.mxu0 0.0
        %2156 = vmatpush1.msra.mxu0 0.0
        %2157 = vmatprep.subr.mxu0 0.0
        %2158 = vmatpush1.msra.mxu0 0.0
        %2159 = vmatprep.subr.mxu0 0.0
        %2160 = vmatpush1.msra.mxu0 0.0
        %2161 = vmatprep.subr.mxu0 0.0
        %2162 = vmatpush1.msra.mxu0 0.0
        %2163 = vmatprep.subr.mxu0 0.0
        %2164 = vmatpush1.msra.mxu0 0.0
        %2165 = vmatprep.subr.mxu0 0.0
        %2166 = vmatpush1.msra.mxu0 0.0
        %2167 = vmatprep.subr.mxu0 0.0
        %2168 = vmatpush1.msra.mxu0 0.0
        %2169 = vmatprep.subr.mxu0 0.0
        %2170 = vmatpush1.msra.mxu0 0.0
        %2171 = vmatprep.subr.mxu0 0.0
        %2172 = vmatpush1.msra.mxu0 0.0
        %2173 = vmatprep.subr.mxu0 0.0
        %2174 = vmatpush1.msra.mxu0 0.0
        %2175 = vmatprep.subr.mxu0 0.0
        %2176 = vmatpush1.msra.mxu0 0.0
        %2177 = vmatprep.subr.mxu0 0.0
        %2178 = vmatpush1.msra.mxu0 0.0
        %2179 = vmatprep.subr.mxu0 0.0
        %2180 = vmatpush1.msra.mxu0 0.0
        %2181 = vmatprep.subr.mxu0 0.0
        %2182 = vmatpush1.msra.mxu0 0.0
        %2183 = vmatprep.subr.mxu0 0.0
        %2184 = vmatpush1.msra.mxu0 0.0
        %2185 = vmatprep.subr.mxu0 0.0
        %2186 = vmatpush1.msra.mxu0 0.0
        %2187 = vmatprep.subr.mxu0 0.0
        %2188 = vmatpush1.msra.mxu0 0.0
        %2189 = vmatprep.subr.mxu0 0.0
        %2190 = vmatpush1.msra.mxu0 0.0
        %2191 = vmatprep.subr.mxu0 0.0
        %2192 = vmatpush1.msra.mxu0 0.0
        %2193 = vmatprep.subr.mxu0 0.0
        %2194 = vmatpush1.msra.mxu0 0.0
        %2195 = vmatprep.subr.mxu0 0.0
        %2196 = vmatpush1.msra.mxu0 0.0
        %2197 = vmatprep.subr.mxu0 0.0
        %2198 = vmatpush1.msra.mxu0 0.0
        %2199 = vmatprep.subr.mxu0 0.0
        %2200 = vmatpush1.msra.mxu0 0.0
        %2201 = vmatprep.subr.mxu0 0.0
        %2202 = vmatpush1.msra.mxu0 0.0
        %2203 = vmatprep.subr.mxu0 0.0
        %2204 = vmatpush1.msra.mxu0 0.0
        %2205 = vmatprep.mubr.f32.mxu0 0.0
        %2206 = vmatmul.mubr.f32.gmra.mrb[0].mxu0 %v1101
        %v2207 = vpop.f32.mrb[0].mxu0
        %v2208 = vadd.f32 0.0, %v2207
        %v2209 = vpop.f32.mrb[0].mxu0
        %2210 = vmatprep.mubr.f32.mxu0 0.0
        %2211 = vmatmul.mubr.f32.gmra.mrb[0].mxu0 %v1103
        %v2212 = vpop.f32.mrb[0].mxu0
        %v2213 = vadd.f32 0.0, %v2212
        %v2214 = vpop.f32.mrb[0].mxu0
        %2215 = vmatprep.mubr.f32.mxu0 0.0
        %2216 = vmatmul.mubr.f32.gmra.mrb[0].mxu0 %v1105
        %v2217 = vpop.f32.mrb[0].mxu0
        %v2218 = vadd.f32 0.0, %v2217
        %v2219 = vpop.f32.mrb[0].mxu0
        %2220 = vmatprep.mubr.f32.mxu0 0.0
        %2221 = vmatmul.mubr.f32.gmra.mrb[0].mxu0 %v1107
        %v2222 = vpop.f32.mrb[0].mxu0
        %v2223 = vadd.f32 0.0, %v2222
        %v2224 = vpop.f32.mrb[0].mxu0
        %2225 = vmatprep.mubr.f32.mxu0 0.0
        %2226 = vmatmul.mubr.f32.gmra.mrb[0].mxu0 %v1109
        %v2227 = vpop.f32.mrb[0].mxu0
        %v2228 = vadd.f32 0.0, %v2227
        %v2229 = vpop.f32.mrb[0].mxu0
        %2230 = vmatprep.mubr.f32.mxu0 0.0
        %2231 = vmatmul.mubr.f32.gmra.mrb[0].mxu0 %v1111
        %v2232 = vpop.f32.mrb[0].mxu0
        %v2233 = vadd.f32 0.0, %v2232
        %v2234 = vpop.f32.mrb[0].mxu0
        %2235 = vmatprep.mubr.f32.mxu0 0.0
        %2236 = vmatmul.mubr.f32.gmra.mrb[0].mxu0 %v1113
        %v2237 = vpop.f32.mrb[0].mxu0
        %v2238 = vadd.f32 0.0, %v2237
        %v2239 = vpop.f32.mrb[0].mxu0
        %2240 = vmatprep.mubr.f32.mxu0 0.0
        %2241 = vmatmul.mubr.f32.gmra.mrb[0].mxu0 %v1115
        %v2242 = vpop.f32.mrb[0].mxu0
        %v2243 = vadd.f32 0.0, %v2242
        %v2244 = vpop.f32.mrb[0].mxu0
        %2245 = vmatprep.mubr.f32.mxu0 0.0
        %2246 = vmatmul.mubr.f32.gmra.mrb[0].mxu0 %v1117
        %v2247 = vpop.f32.mrb[0].mxu0
        %v2248 = vadd.f32 0.0, %v2247
        %v2249 = vpop.f32.mrb[0].mxu0
        %2250 = vmatprep.mubr.f32.mxu0 0.0
        %2251 = vmatmul.mubr.f32.gmra.mrb[0].mxu0 %v1119
        %v2252 = vpop.f32.mrb[0].mxu0
        %v2253 = vadd.f32 0.0, %v2252
        %v2254 = vpop.f32.mrb[0].mxu0
        %2255 = vmatprep.mubr.f32.mxu0 0.0
        %2256 = vmatmul.mubr.f32.gmra.mrb[0].mxu0 %v1121
        %v2257 = vpop.f32.mrb[0].mxu0
        %v2258 = vadd.f32 0.0, %v2257
        %v2259 = vpop.f32.mrb[0].mxu0
        %2260 = vmatprep.mubr.f32.mxu0 0.0
        %2261 = vmatmul.mubr.f32.gmra.mrb[0].mxu0 %v1123
        %v2262 = vpop.f32.mrb[0].mxu0
        %v2263 = vadd.f32 0.0, %v2262
        %v2264 = vpop.f32.mrb[0].mxu0
        %2265 = vmatprep.mubr.f32.mxu0 0.0
        %2266 = vmatmul.mubr.f32.gmra.mrb[0].mxu0 %v1629
        %v2267 = vpop.f32.mrb[0].mxu0
        %v2268 = vadd.f32 0.0, %v2267
        %v2269 = vpop.f32.mrb[0].mxu0
        %2270 = vmatprep.mubr.f32.mxu0 0.0
        %2271 = vmatmul.mubr.f32.gmra.mrb[0].mxu0 %v1631
        %v2272 = vpop.f32.mrb[0].mxu0
        %v2273 = vadd.f32 0.0, %v2272
        %v2274 = vpop.f32.mrb[0].mxu0
        %2275 = vmatprep.mubr.f32.mxu0 0.0
        %2276 = vmatmul.mubr.f32.gmra.mrb[0].mxu0 %v2137
        %v2277 = vpop.f32.mrb[0].mxu0
        %v2278 = vadd.f32 0.0, %v2277
        %v2279 = vpop.f32.mrb[0].mxu0
        %2280 = vmatprep.mubr.f32.mxu0 0.0
        %2281 = vmatmul.mubr.f32.gmra.mrb[0].mxu0 %v2139
        %v2282 = vpop.f32.mrb[0].mxu0
        %v2283 = vadd.f32 0.0, %v2282
        %v2284 = vpop.f32.mrb[0].mxu0
        %2285 = vdwg.mxu0
        %v2286 = vadd.f32 %v2116, %v2208
        %v2287 = vadd.f32 %v2117, %v2213
        %v2288 = vadd.f32 %v2118, %v2218
        %v2289 = vadd.f32 %v2119, %v2223
        %v2290 = vadd.f32 %v2120, %v2228
        %v2291 = vadd.f32 %v2121, %v2233
        %v2292 = vadd.f32 %v2122, %v2238
        %v2293 = vadd.f32 %v2123, %v2243
        %v2294 = vadd.f32 %v2124, %v2248
        %v2295 = vadd.f32 %v2125, %v2253
        %v2296 = vadd.f32 %v2126, %v2258
        %v2297 = vadd.f32 %v2127, %v2263
        %v2298 = vadd.f32 %v2128, %v2268
        %v2299 = vadd.f32 %v2129, %v2273
        %v2300 = vadd.f32 %v2130, %v2278
        %v2301 = vadd.f32 %v2131, %v2283
        %v2302 = vmax.f32 %v2286, 0.0
        %v2303 = vmax.f32 %v2287, 0.0
        %v2304 = vmax.f32 %v2288, 0.0
        %v2305 = vmax.f32 %v2289, 0.0
        %v2306 = vmax.f32 %v2290, 0.0
        %v2307 = vmax.f32 %v2291, 0.0
        %v2308 = vmax.f32 %v2292, 0.0
        %v2309 = vmax.f32 %v2293, 0.0
        %v2310 = vmax.f32 %v2294, 0.0
        %v2311 = vmax.f32 %v2295, 0.0
        %v2312 = vmax.f32 %v2296, 0.0
        %v2313 = vmax.f32 %v2297, 0.0
        %v2314 = vmax.f32 %v2298, 0.0
        %v2315 = vmax.f32 %v2299, 0.0
        %v2316 = vmax.f32 %v2300, 0.0
        %v2317 = vmax.f32 %v2301, 0.0
        %v2318 = vld [vmem:[%s3] sm:$0xff]
        %v2320 = vsel %vm697, %v2302, 0
        %v2323 = vsel %vm697, %v2303, 0
        %v2326 = vsel %vm697, %v2304, 0
        %v2329 = vsel %vm697, %v2305, 0
        %v2332 = vsel %vm697, %v2306, 0
        %v2335 = vsel %vm697, %v2307, 0
        %v2338 = vsel %vm697, %v2308, 0
        %v2341 = vsel %vm697, %v2309, 0
        %v2344 = vsel %vm697, %v2310, 0
        %v2347 = vsel %vm697, %v2311, 0
        %v2350 = vsel %vm697, %v2312, 0
        %v2353 = vsel %vm697, %v2313, 0
        %v2356 = vsel %vm697, %v2314, 0
        %v2359 = vsel %vm697, %v2315, 0
        %v2362 = vsel %vm697, %v2316, 0
        %v2365 = vsel %vm697, %v2317, 0
        %2367 = vmatprep.subr.mxu0 0.0
        %2368 = vmatpush1.msra.mxu0 %v2318
        %2369 = vmatprep.subr.mxu0 0.0
        %2370 = vmatpush1.msra.mxu0 0.0
        %2371 = vmatprep.subr.mxu0 0.0
        %2372 = vmatpush1.msra.mxu0 0.0
        %2373 = vmatprep.subr.mxu0 0.0
        %2374 = vmatpush1.msra.mxu0 0.0
        %2375 = vmatprep.subr.mxu0 0.0
        %2376 = vmatpush1.msra.mxu0 0.0
        %2377 = vmatprep.subr.mxu0 0.0
        %2378 = vmatpush1.msra.mxu0 0.0
        %2379 = vmatprep.subr.mxu0 0.0
        %2380 = vmatpush1.msra.mxu0 0.0
        %2381 = vmatprep.subr.mxu0 0.0
        %2382 = vmatpush1.msra.mxu0 0.0
        %2383 = vmatprep.subr.mxu0 0.0
        %2384 = vmatpush1.msra.mxu0 0.0
        %2385 = vmatprep.subr.mxu0 0.0
        %2386 = vmatpush1.msra.mxu0 0.0
        %2387 = vmatprep.subr.mxu0 0.0
        %2388 = vmatpush1.msra.mxu0 0.0
        %2389 = vmatprep.subr.mxu0 0.0
        %2390 = vmatpush1.msra.mxu0 0.0
        %2391 = vmatprep.subr.mxu0 0.0
        %2392 = vmatpush1.msra.mxu0 0.0
        %2393 = vmatprep.subr.mxu0 0.0
        %2394 = vmatpush1.msra.mxu0 0.0
        %2395 = vmatprep.subr.mxu0 0.0
        %2396 = vmatpush1.msra.mxu0 0.0
        %2397 = vmatprep.subr.mxu0 0.0
        %2398 = vmatpush1.msra.mxu0 0.0
        %2399 = vmatprep.subr.mxu0 0.0
        %2400 = vmatpush1.msra.mxu0 0.0
        %2401 = vmatprep.subr.mxu0 0.0
        %2402 = vmatpush1.msra.mxu0 0.0
        %2403 = vmatprep.subr.mxu0 0.0
        %2404 = vmatpush1.msra.mxu0 0.0
        %2405 = vmatprep.subr.mxu0 0.0
        %2406 = vmatpush1.msra.mxu0 0.0
        %2407 = vmatprep.subr.mxu0 0.0
        %2408 = vmatpush1.msra.mxu0 0.0
        %2409 = vmatprep.subr.mxu0 0.0
        %2410 = vmatpush1.msra.mxu0 0.0
        %2411 = vmatprep.subr.mxu0 0.0
        %2412 = vmatpush1.msra.mxu0 0.0
        %2413 = vmatprep.subr.mxu0 0.0
        %2414 = vmatpush1.msra.mxu0 0.0
        %2415 = vmatprep.subr.mxu0 0.0
        %2416 = vmatpush1.msra.mxu0 0.0
        %2417 = vmatprep.subr.mxu0 0.0
        %2418 = vmatpush1.msra.mxu0 0.0
        %2419 = vmatprep.subr.mxu0 0.0
        %2420 = vmatpush1.msra.mxu0 0.0
        %2421 = vmatprep.subr.mxu0 0.0
        %2422 = vmatpush1.msra.mxu0 0.0
        %2423 = vmatprep.subr.mxu0 0.0
        %2424 = vmatpush1.msra.mxu0 0.0
        %2425 = vmatprep.subr.mxu0 0.0
        %2426 = vmatpush1.msra.mxu0 0.0
        %2427 = vmatprep.subr.mxu0 0.0
        %2428 = vmatpush1.msra.mxu0 0.0
        %2429 = vmatprep.subr.mxu0 0.0
        %2430 = vmatpush1.msra.mxu0 0.0
        %2431 = vmatprep.mubr.f32.mxu0 0.0
        %2432 = vmatmul.mubr.f32.gmra.mrb[0].mxu0 %v2320
        %v2433 = vpop.f32.mrb[0].mxu0
        %v2434 = vadd.f32 0.0, %v2433
        %v2435 = vpop.f32.mrb[0].mxu0
        %2436 = vmatprep.mubr.f32.mxu0 0.0
        %2437 = vmatmul.mubr.f32.gmra.mrb[0].mxu0 %v2323
        %v2438 = vpop.f32.mrb[0].mxu0
        %v2439 = vadd.f32 0.0, %v2438
        %v2440 = vpop.f32.mrb[0].mxu0
        %2441 = vmatprep.mubr.f32.mxu0 0.0
        %2442 = vmatmul.mubr.f32.gmra.mrb[0].mxu0 %v2326
        %v2443 = vpop.f32.mrb[0].mxu0
        %v2444 = vadd.f32 0.0, %v2443
        %v2445 = vpop.f32.mrb[0].mxu0
        %2446 = vmatprep.mubr.f32.mxu0 0.0
        %2447 = vmatmul.mubr.f32.gmra.mrb[0].mxu0 %v2329
        %v2448 = vpop.f32.mrb[0].mxu0
        %v2449 = vadd.f32 0.0, %v2448
        %v2450 = vpop.f32.mrb[0].mxu0
        %2451 = vmatprep.mubr.f32.mxu0 0.0
        %2452 = vmatmul.mubr.f32.gmra.mrb[0].mxu0 %v2332
        %v2453 = vpop.f32.mrb[0].mxu0
        %v2454 = vadd.f32 0.0, %v2453
        %v2455 = vpop.f32.mrb[0].mxu0
        %2456 = vmatprep.mubr.f32.mxu0 0.0
        %2457 = vmatmul.mubr.f32.gmra.mrb[0].mxu0 %v2335
        %v2458 = vpop.f32.mrb[0].mxu0
        %v2459 = vadd.f32 0.0, %v2458
        %v2460 = vpop.f32.mrb[0].mxu0
        %2461 = vmatprep.mubr.f32.mxu0 0.0
        %2462 = vmatmul.mubr.f32.gmra.mrb[0].mxu0 %v2338
        %v2463 = vpop.f32.mrb[0].mxu0
        %v2464 = vadd.f32 0.0, %v2463
        %v2465 = vpop.f32.mrb[0].mxu0
        %2466 = vmatprep.mubr.f32.mxu0 0.0
        %2467 = vmatmul.mubr.f32.gmra.mrb[0].mxu0 %v2341
        %v2468 = vpop.f32.mrb[0].mxu0
        %v2469 = vadd.f32 0.0, %v2468
        %v2470 = vpop.f32.mrb[0].mxu0
        %2471 = vmatprep.mubr.f32.mxu0 0.0
        %2472 = vmatmul.mubr.f32.gmra.mrb[0].mxu0 %v2344
        %v2473 = vpop.f32.mrb[0].mxu0
        %v2474 = vadd.f32 0.0, %v2473
        %v2475 = vpop.f32.mrb[0].mxu0
        %2476 = vmatprep.mubr.f32.mxu0 0.0
        %2477 = vmatmul.mubr.f32.gmra.mrb[0].mxu0 %v2347
        %v2478 = vpop.f32.mrb[0].mxu0
        %v2479 = vadd.f32 0.0, %v2478
        %v2480 = vpop.f32.mrb[0].mxu0
        %2481 = vmatprep.mubr.f32.mxu0 0.0
        %2482 = vmatmul.mubr.f32.gmra.mrb[0].mxu0 %v2350
        %v2483 = vpop.f32.mrb[0].mxu0
        %v2484 = vadd.f32 0.0, %v2483
        %v2485 = vpop.f32.mrb[0].mxu0
        %2486 = vmatprep.mubr.f32.mxu0 0.0
        %2487 = vmatmul.mubr.f32.gmra.mrb[0].mxu0 %v2353
        %v2488 = vpop.f32.mrb[0].mxu0
        %v2489 = vadd.f32 0.0, %v2488
        %v2490 = vpop.f32.mrb[0].mxu0
        %2491 = vmatprep.mubr.f32.mxu0 0.0
        %2492 = vmatmul.mubr.f32.gmra.mrb[0].mxu0 %v2356
        %v2493 = vpop.f32.mrb[0].mxu0
        %v2494 = vadd.f32 0.0, %v2493
        %v2495 = vpop.f32.mrb[0].mxu0
        %2496 = vmatprep.mubr.f32.mxu0 0.0
        %2497 = vmatmul.mubr.f32.gmra.mrb[0].mxu0 %v2359
        %v2498 = vpop.f32.mrb[0].mxu0
        %v2499 = vadd.f32 0.0, %v2498
        %v2500 = vpop.f32.mrb[0].mxu0
        %2501 = vmatprep.mubr.f32.mxu0 0.0
        %2502 = vmatmul.mubr.f32.gmra.mrb[0].mxu0 %v2362
        %v2503 = vpop.f32.mrb[0].mxu0
        %v2504 = vadd.f32 0.0, %v2503
        %v2505 = vpop.f32.mrb[0].mxu0
        %2506 = vmatprep.mubr.f32.mxu0 0.0
        %2507 = vmatmul.mubr.f32.gmra.mrb[0].mxu0 %v2365
        %v2508 = vpop.f32.mrb[0].mxu0
        %v2509 = vadd.f32 0.0, %v2508
        %v2510 = vpop.f32.mrb[0].mxu0
        %2511 = vdwg.mxu0
        %v2512 = vmax.f32 %v2434, 0.0
        %v2513 = vmax.f32 %v2439, 0.0
        %v2514 = vmax.f32 %v2444, 0.0
        %v2515 = vmax.f32 %v2449, 0.0
        %v2516 = vmax.f32 %v2454, 0.0
        %v2517 = vmax.f32 %v2459, 0.0
        %v2518 = vmax.f32 %v2464, 0.0
        %v2519 = vmax.f32 %v2469, 0.0
        %v2520 = vmax.f32 %v2474, 0.0
        %v2521 = vmax.f32 %v2479, 0.0
        %v2522 = vmax.f32 %v2484, 0.0
        %v2523 = vmax.f32 %v2489, 0.0
        %v2524 = vmax.f32 %v2494, 0.0
        %v2525 = vmax.f32 %v2499, 0.0
        %v2526 = vmax.f32 %v2504, 0.0
        %v2527 = vmax.f32 %v2509, 0.0
        %v2528 = vrot.slane %v255, 1
        %v2529 = vrot.slane %v256, 1
        %v2530 = vsel %vm656, %v2528, %v2529
        %v2531 = vrot.slane %v257, 1
        %v2532 = vsel %vm656, %v2529, %v2531
        %v2533 = vrot.slane %v258, 1
        %v2534 = vrot.slane %v259, 1
        %v2535 = vsel %vm656, %v2533, %v2534
        %v2536 = vrot.slane %v260, 1
        %v2537 = vsel %vm656, %v2534, %v2536
        %v2538 = vrot.slane %v261, 1
        %v2539 = vrot.slane %v262, 1
        %v2540 = vsel %vm656, %v2538, %v2539
        %v2541 = vrot.slane %v263, 1
        %v2542 = vsel %vm656, %v2539, %v2541
        %v2543 = vrot.slane %v264, 1
        %v2544 = vrot.slane %v265, 1
        %v2545 = vsel %vm656, %v2543, %v2544
        %v2546 = vrot.slane %v266, 1
        %v2547 = vsel %vm656, %v2544, %v2546
        %v2548 = vrot.slane %v267, 1
        %v2549 = vrot.slane %v268, 1
        %v2550 = vsel %vm656, %v2548, %v2549
        %v2551 = vrot.slane %v269, 1
        %v2552 = vsel %vm656, %v2549, %v2551
        %v2553 = vrot.slane %v270, 1
        %v2554 = vrot.slane %v271, 1
        %v2555 = vsel %vm656, %v2553, %v2554
        %v2556 = vrot.slane %v272, 1
        %v2557 = vsel %vm656, %v2554, %v2556
        %v2558 = vrot.slane %v273, 1
        %v2559 = vrot.slane %v274, 1
        %v2560 = vsel %vm656, %v2558, %v2559
        %v2561 = vrot.slane %v275, 1
        %v2562 = vsel %vm656, %v2559, %v2561
        %v2563 = vrot.slane %v276, 1
        %v2564 = vrot.slane %v277, 1
        %v2565 = vsel %vm656, %v2563, %v2564
        %v2566 = vrot.slane %v278, 1
        %v2567 = vsel %vm656, %v2564, %v2566
        %v2568 = vld [vmem:[%s4] sm:$0xf]
        %v2569 = vsel %vm283, %v2530, 0
        %v2571 = vsel %vm283, %v2532, 0
        %v2573 = vsel %vm283, %v2535, 0
        %v2575 = vsel %vm283, %v2537, 0
        %v2577 = vsel %vm283, %v2540, 0
        %v2579 = vsel %vm283, %v2542, 0
        %v2581 = vsel %vm283, %v2545, 0
        %v2583 = vsel %vm283, %v2547, 0
        %v2585 = vsel %vm283, %v2550, 0
        %v2587 = vsel %vm283, %v2552, 0
        %v2589 = vsel %vm283, %v2555, 0
        %v2591 = vsel %vm283, %v2557, 0
        %v2593 = vsel %vm283, %v2560, 0
        %v2595 = vsel %vm283, %v2562, 0
        %v2597 = vsel %vm283, %v2565, 0
        %v2599 = vsel %vm283, %v2567, 0
        %v2602 = vsel %vm374, %v2568, 0
        %2604 = vmatprep.subr.mxu0 0.0
        %2605 = vmatpush1.msra.mxu0 %v2602
        %2606 = vmatprep.subr.mxu0 0.0
        %2607 = vmatpush1.msra.mxu0 0.0
        %2608 = vmatprep.subr.mxu0 0.0
        %2609 = vmatpush1.msra.mxu0 0.0
        %2610 = vmatprep.subr.mxu0 0.0
        %2611 = vmatpush1.msra.mxu0 0.0
        %2612 = vmatprep.subr.mxu0 0.0
        %2613 = vmatpush1.msra.mxu0 0.0
        %2614 = vmatprep.subr.mxu0 0.0
        %2615 = vmatpush1.msra.mxu0 0.0
        %2616 = vmatprep.subr.mxu0 0.0
        %2617 = vmatpush1.msra.mxu0 0.0
        %2618 = vmatprep.subr.mxu0 0.0
        %2619 = vmatpush1.msra.mxu0 0.0
        %2620 = vmatprep.subr.mxu0 0.0
        %2621 = vmatpush1.msra.mxu0 0.0
        %2622 = vmatprep.subr.mxu0 0.0
        %2623 = vmatpush1.msra.mxu0 0.0
        %2624 = vmatprep.subr.mxu0 0.0
        %2625 = vmatpush1.msra.mxu0 0.0
        %2626 = vmatprep.subr.mxu0 0.0
        %2627 = vmatpush1.msra.mxu0 0.0
        %2628 = vmatprep.subr.mxu0 0.0
        %2629 = vmatpush1.msra.mxu0 0.0
        %2630 = vmatprep.subr.mxu0 0.0
        %2631 = vmatpush1.msra.mxu0 0.0
        %2632 = vmatprep.subr.mxu0 0.0
        %2633 = vmatpush1.msra.mxu0 0.0
        %2634 = vmatprep.subr.mxu0 0.0
        %2635 = vmatpush1.msra.mxu0 0.0
        %2636 = vmatprep.subr.mxu0 0.0
        %2637 = vmatpush1.msra.mxu0 0.0
        %2638 = vmatprep.subr.mxu0 0.0
        %2639 = vmatpush1.msra.mxu0 0.0
        %2640 = vmatprep.subr.mxu0 0.0
        %2641 = vmatpush1.msra.mxu0 0.0
        %2642 = vmatprep.subr.mxu0 0.0
        %2643 = vmatpush1.msra.mxu0 0.0
        %2644 = vmatprep.subr.mxu0 0.0
        %2645 = vmatpush1.msra.mxu0 0.0
        %2646 = vmatprep.subr.mxu0 0.0
        %2647 = vmatpush1.msra.mxu0 0.0
        %2648 = vmatprep.subr.mxu0 0.0
        %2649 = vmatpush1.msra.mxu0 0.0
        %2650 = vmatprep.subr.mxu0 0.0
        %2651 = vmatpush1.msra.mxu0 0.0
        %2652 = vmatprep.subr.mxu0 0.0
        %2653 = vmatpush1.msra.mxu0 0.0
        %2654 = vmatprep.subr.mxu0 0.0
        %2655 = vmatpush1.msra.mxu0 0.0
        %2656 = vmatprep.subr.mxu0 0.0
        %2657 = vmatpush1.msra.mxu0 0.0
        %2658 = vmatprep.subr.mxu0 0.0
        %2659 = vmatpush1.msra.mxu0 0.0
        %2660 = vmatprep.subr.mxu0 0.0
        %2661 = vmatpush1.msra.mxu0 0.0
        %2662 = vmatprep.subr.mxu0 0.0
        %2663 = vmatpush1.msra.mxu0 0.0
        %2664 = vmatprep.subr.mxu0 0.0
        %2665 = vmatpush1.msra.mxu0 0.0
        %2666 = vmatprep.subr.mxu0 0.0
        %2667 = vmatpush1.msra.mxu0 0.0
        %2668 = vmatprep.mubr.f32.mxu0 0.0
        %2669 = vmatmul.mubr.f32.gmra.mrb[0].mxu0 %v2569
        %v2670 = vpop.f32.mrb[0].mxu0
        %v2671 = vadd.f32 0.0, %v2670
        %v2672 = vpop.f32.mrb[0].mxu0
        %2673 = vmatprep.mubr.f32.mxu0 0.0
        %2674 = vmatmul.mubr.f32.gmra.mrb[0].mxu0 %v2571
        %v2675 = vpop.f32.mrb[0].mxu0
        %v2676 = vadd.f32 0.0, %v2675
        %v2677 = vpop.f32.mrb[0].mxu0
        %2678 = vmatprep.mubr.f32.mxu0 0.0
        %2679 = vmatmul.mubr.f32.gmra.mrb[0].mxu0 %v2573
        %v2680 = vpop.f32.mrb[0].mxu0
        %v2681 = vadd.f32 0.0, %v2680
        %v2682 = vpop.f32.mrb[0].mxu0
        %2683 = vmatprep.mubr.f32.mxu0 0.0
        %2684 = vmatmul.mubr.f32.gmra.mrb[0].mxu0 %v2575
        %v2685 = vpop.f32.mrb[0].mxu0
        %v2686 = vadd.f32 0.0, %v2685
        %v2687 = vpop.f32.mrb[0].mxu0
        %2688 = vmatprep.mubr.f32.mxu0 0.0
        %2689 = vmatmul.mubr.f32.gmra.mrb[0].mxu0 %v2577
        %v2690 = vpop.f32.mrb[0].mxu0
        %v2691 = vadd.f32 0.0, %v2690
        %v2692 = vpop.f32.mrb[0].mxu0
        %2693 = vmatprep.mubr.f32.mxu0 0.0
        %2694 = vmatmul.mubr.f32.gmra.mrb[0].mxu0 %v2579
        %v2695 = vpop.f32.mrb[0].mxu0
        %v2696 = vadd.f32 0.0, %v2695
        %v2697 = vpop.f32.mrb[0].mxu0
        %2698 = vmatprep.mubr.f32.mxu0 0.0
        %2699 = vmatmul.mubr.f32.gmra.mrb[0].mxu0 %v2581
        %v2700 = vpop.f32.mrb[0].mxu0
        %v2701 = vadd.f32 0.0, %v2700
        %v2702 = vpop.f32.mrb[0].mxu0
        %2703 = vmatprep.mubr.f32.mxu0 0.0
        %2704 = vmatmul.mubr.f32.gmra.mrb[0].mxu0 %v2583
        %v2705 = vpop.f32.mrb[0].mxu0
        %v2706 = vadd.f32 0.0, %v2705
        %v2707 = vpop.f32.mrb[0].mxu0
        %2708 = vmatprep.mubr.f32.mxu0 0.0
        %2709 = vmatmul.mubr.f32.gmra.mrb[0].mxu0 %v2585
        %v2710 = vpop.f32.mrb[0].mxu0
        %v2711 = vadd.f32 0.0, %v2710
        %v2712 = vpop.f32.mrb[0].mxu0
        %2713 = vmatprep.mubr.f32.mxu0 0.0
        %2714 = vmatmul.mubr.f32.gmra.mrb[0].mxu0 %v2587
        %v2715 = vpop.f32.mrb[0].mxu0
        %v2716 = vadd.f32 0.0, %v2715
        %v2717 = vpop.f32.mrb[0].mxu0
        %2718 = vmatprep.mubr.f32.mxu0 0.0
        %2719 = vmatmul.mubr.f32.gmra.mrb[0].mxu0 %v2589
        %v2720 = vpop.f32.mrb[0].mxu0
        %v2721 = vadd.f32 0.0, %v2720
        %v2722 = vpop.f32.mrb[0].mxu0
        %2723 = vmatprep.mubr.f32.mxu0 0.0
        %2724 = vmatmul.mubr.f32.gmra.mrb[0].mxu0 %v2591
        %v2725 = vpop.f32.mrb[0].mxu0
        %v2726 = vadd.f32 0.0, %v2725
        %v2727 = vpop.f32.mrb[0].mxu0
        %2728 = vmatprep.mubr.f32.mxu0 0.0
        %2729 = vmatmul.mubr.f32.gmra.mrb[0].mxu0 %v2593
        %v2730 = vpop.f32.mrb[0].mxu0
        %v2731 = vadd.f32 0.0, %v2730
        %v2732 = vpop.f32.mrb[0].mxu0
        %2733 = vmatprep.mubr.f32.mxu0 0.0
        %2734 = vmatmul.mubr.f32.gmra.mrb[0].mxu0 %v2595
        %v2735 = vpop.f32.mrb[0].mxu0
        %v2736 = vadd.f32 0.0, %v2735
        %v2737 = vpop.f32.mrb[0].mxu0
        %2738 = vmatprep.mubr.f32.mxu0 0.0
        %2739 = vmatmul.mubr.f32.gmra.mrb[0].mxu0 %v2597
        %v2740 = vpop.f32.mrb[0].mxu0
        %v2741 = vadd.f32 0.0, %v2740
        %v2742 = vpop.f32.mrb[0].mxu0
        %2743 = vmatprep.mubr.f32.mxu0 0.0
        %2744 = vmatmul.mubr.f32.gmra.mrb[0].mxu0 %v2599
        %v2745 = vpop.f32.mrb[0].mxu0
        %v2746 = vadd.f32 0.0, %v2745
        %v2747 = vpop.f32.mrb[0].mxu0
        %2748 = vdwg.mxu0
        %v2749 = vadd.f32 %v2512, %v2671
        %v2750 = vadd.f32 %v2513, %v2676
        %v2751 = vadd.f32 %v2514, %v2681
        %v2752 = vadd.f32 %v2515, %v2686
        %v2753 = vadd.f32 %v2516, %v2691
        %v2754 = vadd.f32 %v2517, %v2696
        %v2755 = vadd.f32 %v2518, %v2701
        %v2756 = vadd.f32 %v2519, %v2706
        %v2757 = vadd.f32 %v2520, %v2711
        %v2758 = vadd.f32 %v2521, %v2716
        %v2759 = vadd.f32 %v2522, %v2721
        %v2760 = vadd.f32 %v2523, %v2726
        %v2761 = vadd.f32 %v2524, %v2731
        %v2762 = vadd.f32 %v2525, %v2736
        %v2763 = vadd.f32 %v2526, %v2741
        %v2764 = vadd.f32 %v2527, %v2746
        %vm2765 = vcmask 130048
        %2766 = vst.msk [vmem:[%s241] sm:$0xff] %vm2765, %v2749
        %2767 = vst.msk [vmem:[%s241 + $0x8] sm:$0xff] %vm2765, %v2750
        %2768 = vst.msk [vmem:[%s241 + $0x10] sm:$0xff] %vm2765, %v2751
        %2769 = vst.msk [vmem:[%s241 + $0x18] sm:$0xff] %vm2765, %v2752
        %2770 = vst.msk [vmem:[%s241 + $0x20] sm:$0xff] %vm2765, %v2753
        %2771 = vst.msk [vmem:[%s241 + $0x28] sm:$0xff] %vm2765, %v2754
        %2772 = vst.msk [vmem:[%s241 + $0x30] sm:$0xff] %vm2765, %v2755
        %2773 = vst.msk [vmem:[%s241 + $0x38] sm:$0xff] %vm2765, %v2756
        %2774 = vst.msk [vmem:[%s241 + $0x40] sm:$0xff] %vm2765, %v2757
        %2775 = vst.msk [vmem:[%s241 + $0x48] sm:$0xff] %vm2765, %v2758
        %2776 = vst.msk [vmem:[%s241 + $0x50] sm:$0xff] %vm2765, %v2759
        %2777 = vst.msk [vmem:[%s241 + $0x58] sm:$0xff] %vm2765, %v2760
        %2778 = vst.msk [vmem:[%s241 + $0x60] sm:$0xff] %vm2765, %v2761
        %2779 = vst.msk [vmem:[%s241 + $0x68] sm:$0xff] %vm2765, %v2762
        %2780 = vst.msk [vmem:[%s241 + $0x70] sm:$0xff] %vm2765, %v2763
        %2781 = vst.msk [vmem:[%s241 + $0x78] sm:$0xff] %vm2765, %v2764
        %s2782 = sand.u32 %s153, 1
        %s2783 = scalar_lea.sflag [#allocation3], %s2782
        %s2784 = sand.u32 %s153, 1
        %s2785 = smul.addr %s2784, 128
        %s2786 = scalar_lea.vmem [#allocation2], %s2785
        // Predicated region
        $region41: #{tpu_custom_call.1} parent=39 // pred_check
          %p2787 = pneg %p163
        $region42: #{tpu_custom_call.1} parent=39 // pred_check_branch
          %2789 = sbr.rel (%p2787) target = $region44
        $region43: #{tpu_custom_call.1} parent=39 // pred_region
          %s2790 = smul.u32 8, %s24
          %s2792 = ssub.s32 2048, 2048
          %2793 = vsyncadd %s2783, %s2792
          %s2794 = smul.addr %s2790, 2
          %s2795 = smul.addr %s23, 32
          %s2796 = sadd.s32 %s2794, %s2795
          %s2797 = smul.addr %s2796, 128
          %s2798 = scalar_lea.hbm %s5, %s2797
          %s2799 = sshll.u32 %s2786, 4
          %s2800 = int_to_ptr.vmem [resolvable:$true] %s2799
          %2805 = dma.vmem_to_hbm [thread:$0]  %s2800, 2048, %s2798, %s2783, 128, 128, 8
        $region44: #{tpu_custom_call.1} parent=39 // pred_fallthru
          _
      $region40: #{tpu_custom_call.1} parent=5 // pred_fallthru
        _
      %p2806 = scmp.le.s32.totalorder 2, %s14
      // Predicated region
      $region45: #{tpu_custom_call.1} parent=5 // pred_check
        %p2807 = pneg %p2806
      $region46: #{tpu_custom_call.1} parent=5 // pred_check_branch
        %2809 = sbr.rel (%p2807) target = $region48
      $region47: #{tpu_custom_call.1} parent=5 // pred_region
        %s2810 = ssub.s32 %s14, 2
        // Predicated region
        $region49: #{tpu_custom_call.1} parent=47 // pred_check
          %p2811 = pneg %p169
        $region50: #{tpu_custom_call.1} parent=47 // pred_check_branch
          %2813 = sbr.rel (%p2811) target = $region52
        $region51: #{tpu_custom_call.1} parent=47 // pred_region
          %s2814 = sand.u32 %s154, 1
          %s2815 = scalar_lea.sflag [#allocation3], %s2814
          %s2816 = sand.u32 %s154, 1
          %s2817 = smul.addr %s2816, 128
          %s2818 = scalar_lea.vmem [#allocation2], %s2817
          %2819 = dma.done %s2815, 2048
        $region52: #{tpu_custom_call.1} parent=47 // pred_fallthru
          _
      $region48: #{tpu_custom_call.1} parent=5 // pred_fallthru
        _
    $region6: #{tpu_custom_call.1} parent=1 // loop_footer
      %s18 = sadd.s32 1, %s14
    $region7: #{tpu_custom_call.1} parent=1 // loop_footer_branch
      %13 = sbr.rel target = $region3
    $region8: #{tpu_custom_call.1} parent=1 // loop_exit
      _
    %2820 = vsyncpa [#allocation3], 1
    %s2821 = scalar_lea.sflag [#allocation3], 1
    %2822 = vsyncpa %s2821, 1

</llo_original>
